<compile_context>
chip_gen: v7x
topology: tpu7x:2x2x1
jax: 0.10.0
libtpu: 0.0.40
codegen_flags: <defaults>
</compile_context>

<pallas_src>
import functools

import jax
import jax.numpy as jnp
from jax import lax
from jax.experimental import pallas as pl
from jax.experimental.pallas import tpu as pltpu

K = 7            # CBAM spatial-attention kernel size
PAD = K // 2


def _lane_roll(v, shift, size):
    """np.roll(v, shift) along the last (lane) axis; skip when it is a no-op."""
    shift = shift % size
    if shift == 0:
        return v
    return pltpu.roll(v, shift, 1)


def neck_bridge_kernel(x_ref, wbT_ref, bb_ref, wcT_ref, bc_ref,
                       xmask_ref, ymask_ref, wsp_ref, o_ref, *, width):
    """Per-image NeckBridge forward in lane-dense (C, H*W) layout.

    x_ref    : (Cin,  HW)   VMEM  input image, channels on sublanes, pixels on lanes
    wbT_ref  : (Cout, Cin)  VMEM  backbone 1x1 conv weight, transposed (out, in)
    bb_ref   : (Cout, 1)    VMEM  backbone bias (column)
    wcT_ref  : (Cout, Cout) VMEM  channel-attention fc weight, transposed (out, in)
    bc_ref   : (Cout, 1)    VMEM  channel-attention bias (column)
    xmask_ref: (K, HW)      VMEM  column-validity masks of the 7x7 SAME conv, one row per dx
    ymask_ref: (K, HW)      VMEM  row-validity masks, one row per dy
    wsp_ref  : (2*K*K,)     SMEM  spatial-attention conv weight, flat [cin, kh, kw]
    o_ref    : (Cout, HW)   VMEM  output image (lane-dense store, last dim = H*W)
    """
    Cout, HW = o_ref.shape

    # ---- 1. backbone stand-in: 1x1 conv as an MXU matmul (bf16 in, f32 acc) ----
    y = jnp.dot(wbT_ref[...].astype(jnp.bfloat16), x_ref[...].astype(jnp.bfloat16),
                preferred_element_type=jnp.float32) + bb_ref[...]             # (Cout, HW)

    # ---- 2. CBAM channel attention ----
    pooled = jnp.mean(y, axis=1, keepdims=True)                               # (Cout, 1)
    # tiny fc: broadcast the pooled column to one full MXU lane tile instead of an N=1 matvec
    pooled_b = jnp.broadcast_to(pooled, (Cout, 128))
    logits = jnp.dot(wcT_ref[...], pooled_b,
                     preferred_element_type=jnp.float32)[:, 0:1] + bc_ref[...]
    ca = jax.nn.sigmoid(logits)                                               # (Cout, 1)
    y = y * ca                                                                # per-channel scale

    # ---- 3. CBAM spatial attention: 7x7 conv over [mean_c, max_c], zero SAME padding ----
    mean_c = jnp.mean(y, axis=0, keepdims=True)                               # (1, HW)
    max_c = jnp.max(y, axis=0, keepdims=True)                                 # (1, HW)

    # hoist all 98 tap weights (SMEM scalar loads) out of the FMA chain
    w_mean = [[wsp_ref[dy * K + dx] for dx in range(K)] for dy in range(K)]
    w_max = [[wsp_ref[K * K + dy * K + dx] for dx in range(K)] for dy in range(K)]

    # stage 1: the 7 column (dx) shifts, done once, with column-validity folded in (XLU rolls)
    g_mean, g_max = [], []
    for dx in range(K):
        xm = xmask_ref[pl.ds(dx, 1), :]                                       # (1, HW)
        g_mean.append(_lane_roll(mean_c, -(dx - PAD), HW) * xm)
        g_max.append(_lane_roll(max_c, -(dx - PAD), HW) * xm)

    # stage 2: per-dy weighted sum of the pre-shifted maps, then one row shift + row mask
    acc = jnp.zeros((1, HW), jnp.float32)
    for dy in range(K):
        part = jnp.zeros((1, HW), jnp.float32)
        for dx in range(K):
            part = part + w_mean[dy][dx] * g_mean[dx] + w_max[dy][dx] * g_max[dx]
        ym = ymask_ref[pl.ds(dy, 1), :]                                       # (1, HW)
        acc = acc + _lane_roll(part, -(dy - PAD) * width, HW) * ym
    sa = jax.nn.sigmoid(acc)                                                  # (1, HW)

    o_ref[...] = (y * sa).astype(o_ref.dtype)                                 # lane-dense store


def neck_bridge_pallas(x_nchw, params):
    """x_nchw: (B, Cin, H, W) float32 -> (B, Cout, H, W) float32 (native NCHW, no transposes)."""
    wb, bb, wc, bc, wsp = params
    B, Cin, H, W = x_nchw.shape
    Cout = wb.shape[1]
    HW = H * W

    x2 = x_nchw.reshape(B, Cin, HW).astype(jnp.float32)          # free trailing-dim collapse
    wbT = jnp.transpose(wb)                                      # (Cout, Cin)  tiny
    wcT = jnp.transpose(wc)                                      # (Cout, Cout) tiny
    bb_col = bb.reshape(Cout, 1)
    bc_col = bc.reshape(Cout, 1)
    wsp_flat = wsp.reshape(-1).astype(jnp.float32)               # (2*K*K,) SMEM scalars

    # boundary-validity masks of the 7x7 SAME conv, built once outside the kernel
    xi = jnp.arange(HW, dtype=jnp.int32) % W
    yi = jnp.arange(HW, dtype=jnp.int32) // W
    offs = jnp.arange(K, dtype=jnp.int32)[:, None] - PAD                           # (K, 1)
    xmask = ((xi[None, :] + offs >= 0) & (xi[None, :] + offs < W)).astype(jnp.float32)
    ymask = ((yi[None, :] + offs >= 0) & (yi[None, :] + offs < H)).astype(jnp.float32)

    out = pl.pallas_call(
        functools.partial(neck_bridge_kernel, width=W),
        out_shape=jax.ShapeDtypeStruct((B, Cout, HW), jnp.float32),
        grid=(B,),
        in_specs=[
            pl.BlockSpec((None, Cin, HW), lambda b: (b, 0, 0)),   # x, lane-dense per image
            pl.BlockSpec((Cout, Cin), lambda b: (0, 0)),          # wbT
            pl.BlockSpec((Cout, 1), lambda b: (0, 0)),            # bb
            pl.BlockSpec((Cout, Cout), lambda b: (0, 0)),         # wcT
            pl.BlockSpec((Cout, 1), lambda b: (0, 0)),            # bc
            pl.BlockSpec((K, HW), lambda b: (0, 0)),              # xmask
            pl.BlockSpec((K, HW), lambda b: (0, 0)),              # ymask
            pl.BlockSpec(memory_space=pltpu.MemorySpace.SMEM),    # wsp (scalar taps)
        ],
        out_specs=pl.BlockSpec((None, Cout, HW), lambda b: (b, 0, 0)),
        compiler_params=pltpu.CompilerParams(
            dimension_semantics=("parallel",),
            vmem_limit_bytes=32 * 1024 * 1024),
    )(x2, wbT, bb_col, wcT, bc_col, xmask, ymask, wsp_flat)

    return out.reshape(B, Cout, H, W)                            # free trailing-dim split


def neck_bridge_reference(x_nchw, params):
    """Pure-JAX reference with identical semantics (bf16 MXU inputs on the backbone conv)."""
    wb, bb, wc, bc, wsp = params
    x = jnp.transpose(x_nchw, (0, 2, 3, 1))                      # NHWC for lax.conv convenience
    y = jnp.einsum('bhwc,cd->bhwd', x.astype(jnp.bfloat16), wb.astype(jnp.bfloat16),
                   preferred_element_type=jnp.float32) + bb      # backbone 1x1 conv
    pooled = jnp.mean(y, axis=(1, 2))                            # (B, Cout)
    ca = jax.nn.sigmoid(jnp.dot(pooled, wc, precision=lax.Precision.HIGHEST) + bc)
    y = y * ca[:, None, None, :]
    feat = jnp.stack([jnp.mean(y, -1), jnp.max(y, -1)], axis=-1)  # (B, H, W, 2)
    w_hwio = jnp.transpose(wsp, (1, 2, 0))[..., None]             # (7, 7, 2, 1)
    sa = jax.nn.sigmoid(lax.conv_general_dilated(
        feat, w_hwio, (1, 1), 'SAME',
        dimension_numbers=('NHWC', 'HWIO', 'NHWC'),
        precision=lax.Precision.HIGHEST))
    out = y * sa
    return jnp.transpose(out, (0, 3, 1, 2))


def init_params(key, cin, cout):
    k1, k2, k3, k4, k5 = jax.random.split(key, 5)
    wb = 0.1 * jax.random.normal(k1, (cin, cout), jnp.float32)        # backbone 1x1 (in, out)
    bb = 0.1 * jax.random.normal(k2, (cout,), jnp.float32)
    wc = 0.1 * jax.random.normal(k3, (cout, cout), jnp.float32)       # channel-att fc (in, out)
    bc = 0.1 * jax.random.normal(k4, (cout,), jnp.float32)
    wsp = 0.1 * jax.random.normal(k5, (2, K, K), jnp.float32)         # spatial-att conv (cin, kh, kw)
    return wb, bb, wc, bc, wsp


if __name__ == "__main__":
    B, Cin, Cout, H, W = 2, 8, 16, 16, 16
    key = jax.random.PRNGKey(0)
    kx, kp = jax.random.split(key)
    x = jax.random.normal(kx, (B, Cin, H, W), jnp.float32)            # PyTorch-style NCHW
    params = init_params(kp, Cin, Cout)

    out = jax.block_until_ready(neck_bridge_pallas(x, params))
    ref = jax.block_until_ready(neck_bridge_reference(x, params))

    assert out.shape == (B, Cout, H, W), out.shape
    assert jnp.allclose(out, ref, atol=2e-3, rtol=2e-3), float(jnp.max(jnp.abs(out - ref)))
    print("KERNEL_OK")
</pallas_src>

<mosaic_0001>
module attributes {stable_mosaic.version = 11 : i64} {
  func.func @neck_bridge_kernel(%arg0: i32, %arg1: memref<1x8x256xf32, #tpu.memory_space<vmem>>, %arg2: memref<16x8xf32, #tpu.memory_space<vmem>>, %arg3: memref<16x1xf32, #tpu.memory_space<vmem>>, %arg4: memref<16x16xf32, #tpu.memory_space<vmem>>, %arg5: memref<16x1xf32, #tpu.memory_space<vmem>>, %arg6: memref<7x256xf32, #tpu.memory_space<vmem>>, %arg7: memref<7x256xf32, #tpu.memory_space<vmem>>, %arg8: memref<98xf32, #tpu.memory_space<smem>>, %arg9: memref<1x16x256xf32, #tpu.memory_space<vmem>>) attributes {dimension_semantics = [#tpu.dimension_semantics<parallel>], iteration_bounds = array<i64: 2>, scalar_prefetch = 0 : i64, scratch_operands = 0 : i64, tpu.core_type = #tpu.core_type<tc>, window_params = [{transform_indices = @transform_0, window_bounds = array<i64: 1, 8, 256>}, {pipeline_mode = #tpu.pipeline_mode<synchronous>, transform_indices = @transform_1, window_bounds = array<i64: 16, 8>}, {pipeline_mode = #tpu.pipeline_mode<synchronous>, transform_indices = @transform_2, window_bounds = array<i64: 16, 1>}, {pipeline_mode = #tpu.pipeline_mode<synchronous>, transform_indices = @transform_3, window_bounds = array<i64: 16, 16>}, {pipeline_mode = #tpu.pipeline_mode<synchronous>, transform_indices = @transform_4, window_bounds = array<i64: 16, 1>}, {pipeline_mode = #tpu.pipeline_mode<synchronous>, transform_indices = @transform_5, window_bounds = array<i64: 7, 256>}, {pipeline_mode = #tpu.pipeline_mode<synchronous>, transform_indices = @transform_6, window_bounds = array<i64: 7, 256>}, {transform_indices = @transform_7, window_bounds = array<i64: 98>}, {transform_indices = @transform_8, window_bounds = array<i64: 1, 16, 256>}]} {
    %c0 = arith.constant 0 : index
    %c0_0 = arith.constant 0 : index
    %0 = vector.load %arg2[%c0, %c0_0] : memref<16x8xf32, #tpu.memory_space<vmem>>, vector<16x8xf32>
    %1 = arith.truncf %0 : vector<16x8xf32> to vector<16x8xbf16>
    %c0_1 = arith.constant 0 : index
    %c0_2 = arith.constant 0 : index
    %c0_3 = arith.constant 0 : index
    %2 = vector.load %arg1[%c0_1, %c0_2, %c0_3] : memref<1x8x256xf32, #tpu.memory_space<vmem>>, vector<1x8x256xf32>
    %3 = vector.shape_cast %2 : vector<1x8x256xf32> to vector<8x256xf32>
    %4 = arith.truncf %3 : vector<8x256xf32> to vector<8x256xbf16>
    %cst = arith.constant dense<0.000000e+00> : vector<16x256xf32>
    %5 = tpu.matmul %1, %4, %cst {dimension_numbers = #tpu.dot_dimension_numbers<[1], [0], [0], [1], [0, 0, 1, 1], [], []>} : vector<16x8xbf16>, vector<8x256xbf16>, vector<16x256xf32> -> vector<16x256xf32>
    %c0_4 = arith.constant 0 : index
    %c0_5 = arith.constant 0 : index
    %6 = vector.load %arg3[%c0_4, %c0_5] : memref<16x1xf32, #tpu.memory_space<vmem>>, vector<16x1xf32>
    %7 = vector.broadcast %6 : vector<16x1xf32> to vector<16x256xf32>
    %8 = arith.addf %5, %7 : vector<16x256xf32>
    %cst_6 = arith.constant dense<0.000000e+00> : vector<16xf32>
    %9 = vector.multi_reduction <add>, %8, %cst_6 [1] : vector<16x256xf32> to vector<16xf32>
    %10 = vector.shape_cast %9 : vector<16xf32> to vector<16x1xf32>
    %cst_7 = arith.constant 2.560000e+02 : f32
    %11 = vector.broadcast %cst_7 : f32 to vector<16x1xf32>
    %12 = arith.divf %10, %11 : vector<16x1xf32>
    %13 = vector.shape_cast %12 : vector<16x1xf32> to vector<16x1xf32>
    %14 = vector.broadcast %13 : vector<16x1xf32> to vector<16x128xf32>
    %c0_8 = arith.constant 0 : index
    %c0_9 = arith.constant 0 : index
    %15 = vector.load %arg4[%c0_8, %c0_9] : memref<16x16xf32, #tpu.memory_space<vmem>>, vector<16x16xf32>
    %cst_10 = arith.constant dense<0.000000e+00> : vector<16x128xf32>
    %16 = tpu.matmul %15, %14, %cst_10 {dimension_numbers = #tpu.dot_dimension_numbers<[1], [0], [0], [1], [0, 0, 1, 1], [], []>} : vector<16x16xf32>, vector<16x128xf32>, vector<16x128xf32> -> vector<16x128xf32>
    %17 = vector.extract_strided_slice %16 {offsets = [0, 0], sizes = [16, 1], strides = [1, 1]} : vector<16x128xf32> to vector<16x1xf32>
    %c0_11 = arith.constant 0 : index
    %c0_12 = arith.constant 0 : index
    %18 = vector.load %arg5[%c0_11, %c0_12] : memref<16x1xf32, #tpu.memory_space<vmem>>, vector<16x1xf32>
    %19 = arith.addf %17, %18 : vector<16x1xf32>
    %20 = arith.negf %19 : vector<16x1xf32>
    %21 = math.exp %20 : vector<16x1xf32>
    %cst_13 = arith.constant 1.000000e+00 : f32
    %22 = vector.broadcast %cst_13 : f32 to vector<16x1xf32>
    %23 = arith.addf %22, %21 : vector<16x1xf32>
    %24 = arith.divf %22, %23 : vector<16x1xf32>
    %25 = vector.broadcast %24 : vector<16x1xf32> to vector<16x256xf32>
    %26 = arith.mulf %8, %25 : vector<16x256xf32>
    %cst_14 = arith.constant dense<0.000000e+00> : vector<256xf32>
    %27 = vector.multi_reduction <add>, %26, %cst_14 [0] : vector<16x256xf32> to vector<256xf32>
    %28 = vector.shape_cast %27 : vector<256xf32> to vector<1x256xf32>
    %cst_15 = arith.constant 1.600000e+01 : f32
    %29 = vector.broadcast %cst_15 : f32 to vector<1x256xf32>
    %30 = arith.divf %28, %29 : vector<1x256xf32>
    %cst_16 = arith.constant dense<0xFF800000> : vector<256xf32>
    %31 = vector.multi_reduction <maximumf>, %26, %cst_16 [0] : vector<16x256xf32> to vector<256xf32>
    %32 = vector.shape_cast %31 : vector<256xf32> to vector<1x256xf32>
    %c0_17 = arith.constant 0 : index
    %33 = memref.load %arg8[%c0_17] : memref<98xf32, #tpu.memory_space<smem>>
    %c1 = arith.constant 1 : index
    %34 = memref.load %arg8[%c1] : memref<98xf32, #tpu.memory_space<smem>>
    %c2 = arith.constant 2 : index
    %35 = memref.load %arg8[%c2] : memref<98xf32, #tpu.memory_space<smem>>
    %c3 = arith.constant 3 : index
    %36 = memref.load %arg8[%c3] : memref<98xf32, #tpu.memory_space<smem>>
    %c4 = arith.constant 4 : index
    %37 = memref.load %arg8[%c4] : memref<98xf32, #tpu.memory_space<smem>>
    %c5 = arith.constant 5 : index
    %38 = memref.load %arg8[%c5] : memref<98xf32, #tpu.memory_space<smem>>
    %c6 = arith.constant 6 : index
    %39 = memref.load %arg8[%c6] : memref<98xf32, #tpu.memory_space<smem>>
    %c7 = arith.constant 7 : index
    %40 = memref.load %arg8[%c7] : memref<98xf32, #tpu.memory_space<smem>>
    %c8 = arith.constant 8 : index
    %41 = memref.load %arg8[%c8] : memref<98xf32, #tpu.memory_space<smem>>
    %c9 = arith.constant 9 : index
    %42 = memref.load %arg8[%c9] : memref<98xf32, #tpu.memory_space<smem>>
    %c10 = arith.constant 10 : index
    %43 = memref.load %arg8[%c10] : memref<98xf32, #tpu.memory_space<smem>>
    %c11 = arith.constant 11 : index
    %44 = memref.load %arg8[%c11] : memref<98xf32, #tpu.memory_space<smem>>
    %c12 = arith.constant 12 : index
    %45 = memref.load %arg8[%c12] : memref<98xf32, #tpu.memory_space<smem>>
    %c13 = arith.constant 13 : index
    %46 = memref.load %arg8[%c13] : memref<98xf32, #tpu.memory_space<smem>>
    %c14 = arith.constant 14 : index
    %47 = memref.load %arg8[%c14] : memref<98xf32, #tpu.memory_space<smem>>
    %c15 = arith.constant 15 : index
    %48 = memref.load %arg8[%c15] : memref<98xf32, #tpu.memory_space<smem>>
    %c16 = arith.constant 16 : index
    %49 = memref.load %arg8[%c16] : memref<98xf32, #tpu.memory_space<smem>>
    %c17 = arith.constant 17 : index
    %50 = memref.load %arg8[%c17] : memref<98xf32, #tpu.memory_space<smem>>
    %c18 = arith.constant 18 : index
    %51 = memref.load %arg8[%c18] : memref<98xf32, #tpu.memory_space<smem>>
    %c19 = arith.constant 19 : index
    %52 = memref.load %arg8[%c19] : memref<98xf32, #tpu.memory_space<smem>>
    %c20 = arith.constant 20 : index
    %53 = memref.load %arg8[%c20] : memref<98xf32, #tpu.memory_space<smem>>
    %c21 = arith.constant 21 : index
    %54 = memref.load %arg8[%c21] : memref<98xf32, #tpu.memory_space<smem>>
    %c22 = arith.constant 22 : index
    %55 = memref.load %arg8[%c22] : memref<98xf32, #tpu.memory_space<smem>>
    %c23 = arith.constant 23 : index
    %56 = memref.load %arg8[%c23] : memref<98xf32, #tpu.memory_space<smem>>
    %c24 = arith.constant 24 : index
    %57 = memref.load %arg8[%c24] : memref<98xf32, #tpu.memory_space<smem>>
    %c25 = arith.constant 25 : index
    %58 = memref.load %arg8[%c25] : memref<98xf32, #tpu.memory_space<smem>>
    %c26 = arith.constant 26 : index
    %59 = memref.load %arg8[%c26] : memref<98xf32, #tpu.memory_space<smem>>
    %c27 = arith.constant 27 : index
    %60 = memref.load %arg8[%c27] : memref<98xf32, #tpu.memory_space<smem>>
    %c28 = arith.constant 28 : index
    %61 = memref.load %arg8[%c28] : memref<98xf32, #tpu.memory_space<smem>>
    %c29 = arith.constant 29 : index
    %62 = memref.load %arg8[%c29] : memref<98xf32, #tpu.memory_space<smem>>
    %c30 = arith.constant 30 : index
    %63 = memref.load %arg8[%c30] : memref<98xf32, #tpu.memory_space<smem>>
    %c31 = arith.constant 31 : index
    %64 = memref.load %arg8[%c31] : memref<98xf32, #tpu.memory_space<smem>>
    %c32 = arith.constant 32 : index
    %65 = memref.load %arg8[%c32] : memref<98xf32, #tpu.memory_space<smem>>
    %c33 = arith.constant 33 : index
    %66 = memref.load %arg8[%c33] : memref<98xf32, #tpu.memory_space<smem>>
    %c34 = arith.constant 34 : index
    %67 = memref.load %arg8[%c34] : memref<98xf32, #tpu.memory_space<smem>>
    %c35 = arith.constant 35 : index
    %68 = memref.load %arg8[%c35] : memref<98xf32, #tpu.memory_space<smem>>
    %c36 = arith.constant 36 : index
    %69 = memref.load %arg8[%c36] : memref<98xf32, #tpu.memory_space<smem>>
    %c37 = arith.constant 37 : index
    %70 = memref.load %arg8[%c37] : memref<98xf32, #tpu.memory_space<smem>>
    %c38 = arith.constant 38 : index
    %71 = memref.load %arg8[%c38] : memref<98xf32, #tpu.memory_space<smem>>
    %c39 = arith.constant 39 : index
    %72 = memref.load %arg8[%c39] : memref<98xf32, #tpu.memory_space<smem>>
    %c40 = arith.constant 40 : index
    %73 = memref.load %arg8[%c40] : memref<98xf32, #tpu.memory_space<smem>>
    %c41 = arith.constant 41 : index
    %74 = memref.load %arg8[%c41] : memref<98xf32, #tpu.memory_space<smem>>
    %c42 = arith.constant 42 : index
    %75 = memref.load %arg8[%c42] : memref<98xf32, #tpu.memory_space<smem>>
    %c43 = arith.constant 43 : index
    %76 = memref.load %arg8[%c43] : memref<98xf32, #tpu.memory_space<smem>>
    %c44 = arith.constant 44 : index
    %77 = memref.load %arg8[%c44] : memref<98xf32, #tpu.memory_space<smem>>
    %c45 = arith.constant 45 : index
    %78 = memref.load %arg8[%c45] : memref<98xf32, #tpu.memory_space<smem>>
    %c46 = arith.constant 46 : index
    %79 = memref.load %arg8[%c46] : memref<98xf32, #tpu.memory_space<smem>>
    %c47 = arith.constant 47 : index
    %80 = memref.load %arg8[%c47] : memref<98xf32, #tpu.memory_space<smem>>
    %c48 = arith.constant 48 : index
    %81 = memref.load %arg8[%c48] : memref<98xf32, #tpu.memory_space<smem>>
    %c49 = arith.constant 49 : index
    %82 = memref.load %arg8[%c49] : memref<98xf32, #tpu.memory_space<smem>>
    %c50 = arith.constant 50 : index
    %83 = memref.load %arg8[%c50] : memref<98xf32, #tpu.memory_space<smem>>
    %c51 = arith.constant 51 : index
    %84 = memref.load %arg8[%c51] : memref<98xf32, #tpu.memory_space<smem>>
    %c52 = arith.constant 52 : index
    %85 = memref.load %arg8[%c52] : memref<98xf32, #tpu.memory_space<smem>>
    %c53 = arith.constant 53 : index
    %86 = memref.load %arg8[%c53] : memref<98xf32, #tpu.memory_space<smem>>
    %c54 = arith.constant 54 : index
    %87 = memref.load %arg8[%c54] : memref<98xf32, #tpu.memory_space<smem>>
    %c55 = arith.constant 55 : index
    %88 = memref.load %arg8[%c55] : memref<98xf32, #tpu.memory_space<smem>>
    %c56 = arith.constant 56 : index
    %89 = memref.load %arg8[%c56] : memref<98xf32, #tpu.memory_space<smem>>
    %c57 = arith.constant 57 : index
    %90 = memref.load %arg8[%c57] : memref<98xf32, #tpu.memory_space<smem>>
    %c58 = arith.constant 58 : index
    %91 = memref.load %arg8[%c58] : memref<98xf32, #tpu.memory_space<smem>>
    %c59 = arith.constant 59 : index
    %92 = memref.load %arg8[%c59] : memref<98xf32, #tpu.memory_space<smem>>
    %c60 = arith.constant 60 : index
    %93 = memref.load %arg8[%c60] : memref<98xf32, #tpu.memory_space<smem>>
    %c61 = arith.constant 61 : index
    %94 = memref.load %arg8[%c61] : memref<98xf32, #tpu.memory_space<smem>>
    %c62 = arith.constant 62 : index
    %95 = memref.load %arg8[%c62] : memref<98xf32, #tpu.memory_space<smem>>
    %c63 = arith.constant 63 : index
    %96 = memref.load %arg8[%c63] : memref<98xf32, #tpu.memory_space<smem>>
    %c64 = arith.constant 64 : index
    %97 = memref.load %arg8[%c64] : memref<98xf32, #tpu.memory_space<smem>>
    %c65 = arith.constant 65 : index
    %98 = memref.load %arg8[%c65] : memref<98xf32, #tpu.memory_space<smem>>
    %c66 = arith.constant 66 : index
    %99 = memref.load %arg8[%c66] : memref<98xf32, #tpu.memory_space<smem>>
    %c67 = arith.constant 67 : index
    %100 = memref.load %arg8[%c67] : memref<98xf32, #tpu.memory_space<smem>>
    %c68 = arith.constant 68 : index
    %101 = memref.load %arg8[%c68] : memref<98xf32, #tpu.memory_space<smem>>
    %c69 = arith.constant 69 : index
    %102 = memref.load %arg8[%c69] : memref<98xf32, #tpu.memory_space<smem>>
    %c70 = arith.constant 70 : index
    %103 = memref.load %arg8[%c70] : memref<98xf32, #tpu.memory_space<smem>>
    %c71 = arith.constant 71 : index
    %104 = memref.load %arg8[%c71] : memref<98xf32, #tpu.memory_space<smem>>
    %c72 = arith.constant 72 : index
    %105 = memref.load %arg8[%c72] : memref<98xf32, #tpu.memory_space<smem>>
    %c73 = arith.constant 73 : index
    %106 = memref.load %arg8[%c73] : memref<98xf32, #tpu.memory_space<smem>>
    %c74 = arith.constant 74 : index
    %107 = memref.load %arg8[%c74] : memref<98xf32, #tpu.memory_space<smem>>
    %c75 = arith.constant 75 : index
    %108 = memref.load %arg8[%c75] : memref<98xf32, #tpu.memory_space<smem>>
    %c76 = arith.constant 76 : index
    %109 = memref.load %arg8[%c76] : memref<98xf32, #tpu.memory_space<smem>>
    %c77 = arith.constant 77 : index
    %110 = memref.load %arg8[%c77] : memref<98xf32, #tpu.memory_space<smem>>
    %c78 = arith.constant 78 : index
    %111 = memref.load %arg8[%c78] : memref<98xf32, #tpu.memory_space<smem>>
    %c79 = arith.constant 79 : index
    %112 = memref.load %arg8[%c79] : memref<98xf32, #tpu.memory_space<smem>>
    %c80 = arith.constant 80 : index
    %113 = memref.load %arg8[%c80] : memref<98xf32, #tpu.memory_space<smem>>
    %c81 = arith.constant 81 : index
    %114 = memref.load %arg8[%c81] : memref<98xf32, #tpu.memory_space<smem>>
    %c82 = arith.constant 82 : index
    %115 = memref.load %arg8[%c82] : memref<98xf32, #tpu.memory_space<smem>>
    %c83 = arith.constant 83 : index
    %116 = memref.load %arg8[%c83] : memref<98xf32, #tpu.memory_space<smem>>
    %c84 = arith.constant 84 : index
    %117 = memref.load %arg8[%c84] : memref<98xf32, #tpu.memory_space<smem>>
    %c85 = arith.constant 85 : index
    %118 = memref.load %arg8[%c85] : memref<98xf32, #tpu.memory_space<smem>>
    %c86 = arith.constant 86 : index
    %119 = memref.load %arg8[%c86] : memref<98xf32, #tpu.memory_space<smem>>
    %c87 = arith.constant 87 : index
    %120 = memref.load %arg8[%c87] : memref<98xf32, #tpu.memory_space<smem>>
    %c88 = arith.constant 88 : index
    %121 = memref.load %arg8[%c88] : memref<98xf32, #tpu.memory_space<smem>>
    %c89 = arith.constant 89 : index
    %122 = memref.load %arg8[%c89] : memref<98xf32, #tpu.memory_space<smem>>
    %c90 = arith.constant 90 : index
    %123 = memref.load %arg8[%c90] : memref<98xf32, #tpu.memory_space<smem>>
    %c91 = arith.constant 91 : index
    %124 = memref.load %arg8[%c91] : memref<98xf32, #tpu.memory_space<smem>>
    %c92 = arith.constant 92 : index
    %125 = memref.load %arg8[%c92] : memref<98xf32, #tpu.memory_space<smem>>
    %c93 = arith.constant 93 : index
    %126 = memref.load %arg8[%c93] : memref<98xf32, #tpu.memory_space<smem>>
    %c94 = arith.constant 94 : index
    %127 = memref.load %arg8[%c94] : memref<98xf32, #tpu.memory_space<smem>>
    %c95 = arith.constant 95 : index
    %128 = memref.load %arg8[%c95] : memref<98xf32, #tpu.memory_space<smem>>
    %c96 = arith.constant 96 : index
    %129 = memref.load %arg8[%c96] : memref<98xf32, #tpu.memory_space<smem>>
    %c97 = arith.constant 97 : index
    %130 = memref.load %arg8[%c97] : memref<98xf32, #tpu.memory_space<smem>>
    %c0_18 = arith.constant 0 : index
    %c0_19 = arith.constant 0 : index
    %131 = vector.load %arg6[%c0_18, %c0_19] : memref<7x256xf32, #tpu.memory_space<vmem>>, vector<1x256xf32>
    %c3_i32 = arith.constant 3 : i32
    %132 = tpu.dynamic_rotate %30 by %c3_i32 dim 1 : vector<1x256xf32>, i32 -> vector<1x256xf32>
    %133 = arith.mulf %132, %131 : vector<1x256xf32>
    %c3_i32_20 = arith.constant 3 : i32
    %134 = tpu.dynamic_rotate %32 by %c3_i32_20 dim 1 : vector<1x256xf32>, i32 -> vector<1x256xf32>
    %135 = arith.mulf %134, %131 : vector<1x256xf32>
    %c1_21 = arith.constant 1 : index
    %c0_22 = arith.constant 0 : index
    %136 = vector.load %arg6[%c1_21, %c0_22] : memref<7x256xf32, #tpu.memory_space<vmem>>, vector<1x256xf32>
    %c2_i32 = arith.constant 2 : i32
    %137 = tpu.dynamic_rotate %30 by %c2_i32 dim 1 : vector<1x256xf32>, i32 -> vector<1x256xf32>
    %138 = arith.mulf %137, %136 : vector<1x256xf32>
    %c2_i32_23 = arith.constant 2 : i32
    %139 = tpu.dynamic_rotate %32 by %c2_i32_23 dim 1 : vector<1x256xf32>, i32 -> vector<1x256xf32>
    %140 = arith.mulf %139, %136 : vector<1x256xf32>
    %c2_24 = arith.constant 2 : index
    %c0_25 = arith.constant 0 : index
    %141 = vector.load %arg6[%c2_24, %c0_25] : memref<7x256xf32, #tpu.memory_space<vmem>>, vector<1x256xf32>
    %c1_i32 = arith.constant 1 : i32
    %142 = tpu.dynamic_rotate %30 by %c1_i32 dim 1 : vector<1x256xf32>, i32 -> vector<1x256xf32>
    %143 = arith.mulf %142, %141 : vector<1x256xf32>
    %c1_i32_26 = arith.constant 1 : i32
    %144 = tpu.dynamic_rotate %32 by %c1_i32_26 dim 1 : vector<1x256xf32>, i32 -> vector<1x256xf32>
    %145 = arith.mulf %144, %141 : vector<1x256xf32>
    %c3_27 = arith.constant 3 : index
    %c0_28 = arith.constant 0 : index
    %146 = vector.load %arg6[%c3_27, %c0_28] : memref<7x256xf32, #tpu.memory_space<vmem>>, vector<1x256xf32>
    %147 = arith.mulf %30, %146 : vector<1x256xf32>
    %148 = arith.mulf %32, %146 : vector<1x256xf32>
    %c4_29 = arith.constant 4 : index
    %c0_30 = arith.constant 0 : index
    %149 = vector.load %arg6[%c4_29, %c0_30] : memref<7x256xf32, #tpu.memory_space<vmem>>, vector<1x256xf32>
    %c255_i32 = arith.constant 255 : i32
    %150 = tpu.dynamic_rotate %30 by %c255_i32 dim 1 : vector<1x256xf32>, i32 -> vector<1x256xf32>
    %151 = arith.mulf %150, %149 : vector<1x256xf32>
    %c255_i32_31 = arith.constant 255 : i32
    %152 = tpu.dynamic_rotate %32 by %c255_i32_31 dim 1 : vector<1x256xf32>, i32 -> vector<1x256xf32>
    %153 = arith.mulf %152, %149 : vector<1x256xf32>
    %c5_32 = arith.constant 5 : index
    %c0_33 = arith.constant 0 : index
    %154 = vector.load %arg6[%c5_32, %c0_33] : memref<7x256xf32, #tpu.memory_space<vmem>>, vector<1x256xf32>
    %c254_i32 = arith.constant 254 : i32
    %155 = tpu.dynamic_rotate %30 by %c254_i32 dim 1 : vector<1x256xf32>, i32 -> vector<1x256xf32>
    %156 = arith.mulf %155, %154 : vector<1x256xf32>
    %c254_i32_34 = arith.constant 254 : i32
    %157 = tpu.dynamic_rotate %32 by %c254_i32_34 dim 1 : vector<1x256xf32>, i32 -> vector<1x256xf32>
    %158 = arith.mulf %157, %154 : vector<1x256xf32>
    %c6_35 = arith.constant 6 : index
    %c0_36 = arith.constant 0 : index
    %159 = vector.load %arg6[%c6_35, %c0_36] : memref<7x256xf32, #tpu.memory_space<vmem>>, vector<1x256xf32>
    %c253_i32 = arith.constant 253 : i32
    %160 = tpu.dynamic_rotate %30 by %c253_i32 dim 1 : vector<1x256xf32>, i32 -> vector<1x256xf32>
    %161 = arith.mulf %160, %159 : vector<1x256xf32>
    %c253_i32_37 = arith.constant 253 : i32
    %162 = tpu.dynamic_rotate %32 by %c253_i32_37 dim 1 : vector<1x256xf32>, i32 -> vector<1x256xf32>
    %163 = arith.mulf %162, %159 : vector<1x256xf32>
    %cst_38 = arith.constant 0.000000e+00 : f32
    %164 = vector.broadcast %cst_38 : f32 to vector<1x256xf32>
    %cst_39 = arith.constant 0.000000e+00 : f32
    %165 = vector.broadcast %cst_39 : f32 to vector<1x256xf32>
    %166 = vector.broadcast %33 : f32 to vector<1x256xf32>
    %167 = arith.mulf %166, %133 : vector<1x256xf32>
    %168 = arith.addf %165, %167 : vector<1x256xf32>
    %169 = vector.broadcast %82 : f32 to vector<1x256xf32>
    %170 = arith.mulf %169, %135 : vector<1x256xf32>
    %171 = arith.addf %168, %170 : vector<1x256xf32>
    %172 = vector.broadcast %34 : f32 to vector<1x256xf32>
    %173 = arith.mulf %172, %138 : vector<1x256xf32>
    %174 = arith.addf %171, %173 : vector<1x256xf32>
    %175 = vector.broadcast %83 : f32 to vector<1x256xf32>
    %176 = arith.mulf %175, %140 : vector<1x256xf32>
    %177 = arith.addf %174, %176 : vector<1x256xf32>
    %178 = vector.broadcast %35 : f32 to vector<1x256xf32>
    %179 = arith.mulf %178, %143 : vector<1x256xf32>
    %180 = arith.addf %177, %179 : vector<1x256xf32>
    %181 = vector.broadcast %84 : f32 to vector<1x256xf32>
    %182 = arith.mulf %181, %145 : vector<1x256xf32>
    %183 = arith.addf %180, %182 : vector<1x256xf32>
    %184 = vector.broadcast %36 : f32 to vector<1x256xf32>
    %185 = arith.mulf %184, %147 : vector<1x256xf32>
    %186 = arith.addf %183, %185 : vector<1x256xf32>
    %187 = vector.broadcast %85 : f32 to vector<1x256xf32>
    %188 = arith.mulf %187, %148 : vector<1x256xf32>
    %189 = arith.addf %186, %188 : vector<1x256xf32>
    %190 = vector.broadcast %37 : f32 to vector<1x256xf32>
    %191 = arith.mulf %190, %151 : vector<1x256xf32>
    %192 = arith.addf %189, %191 : vector<1x256xf32>
    %193 = vector.broadcast %86 : f32 to vector<1x256xf32>
    %194 = arith.mulf %193, %153 : vector<1x256xf32>
    %195 = arith.addf %192, %194 : vector<1x256xf32>
    %196 = vector.broadcast %38 : f32 to vector<1x256xf32>
    %197 = arith.mulf %196, %156 : vector<1x256xf32>
    %198 = arith.addf %195, %197 : vector<1x256xf32>
    %199 = vector.broadcast %87 : f32 to vector<1x256xf32>
    %200 = arith.mulf %199, %158 : vector<1x256xf32>
    %201 = arith.addf %198, %200 : vector<1x256xf32>
    %202 = vector.broadcast %39 : f32 to vector<1x256xf32>
    %203 = arith.mulf %202, %161 : vector<1x256xf32>
    %204 = arith.addf %201, %203 : vector<1x256xf32>
    %205 = vector.broadcast %88 : f32 to vector<1x256xf32>
    %206 = arith.mulf %205, %163 : vector<1x256xf32>
    %207 = arith.addf %204, %206 : vector<1x256xf32>
    %c0_40 = arith.constant 0 : index
    %c0_41 = arith.constant 0 : index
    %208 = vector.load %arg7[%c0_40, %c0_41] : memref<7x256xf32, #tpu.memory_space<vmem>>, vector<1x256xf32>
    %c48_i32 = arith.constant 48 : i32
    %209 = tpu.dynamic_rotate %207 by %c48_i32 dim 1 : vector<1x256xf32>, i32 -> vector<1x256xf32>
    %210 = arith.mulf %209, %208 : vector<1x256xf32>
    %211 = arith.addf %164, %210 : vector<1x256xf32>
    %cst_42 = arith.constant 0.000000e+00 : f32
    %212 = vector.broadcast %cst_42 : f32 to vector<1x256xf32>
    %213 = vector.broadcast %40 : f32 to vector<1x256xf32>
    %214 = arith.mulf %213, %133 : vector<1x256xf32>
    %215 = arith.addf %212, %214 : vector<1x256xf32>
    %216 = vector.broadcast %89 : f32 to vector<1x256xf32>
    %217 = arith.mulf %216, %135 : vector<1x256xf32>
    %218 = arith.addf %215, %217 : vector<1x256xf32>
    %219 = vector.broadcast %41 : f32 to vector<1x256xf32>
    %220 = arith.mulf %219, %138 : vector<1x256xf32>
    %221 = arith.addf %218, %220 : vector<1x256xf32>
    %222 = vector.broadcast %90 : f32 to vector<1x256xf32>
    %223 = arith.mulf %222, %140 : vector<1x256xf32>
    %224 = arith.addf %221, %223 : vector<1x256xf32>
    %225 = vector.broadcast %42 : f32 to vector<1x256xf32>
    %226 = arith.mulf %225, %143 : vector<1x256xf32>
    %227 = arith.addf %224, %226 : vector<1x256xf32>
    %228 = vector.broadcast %91 : f32 to vector<1x256xf32>
    %229 = arith.mulf %228, %145 : vector<1x256xf32>
    %230 = arith.addf %227, %229 : vector<1x256xf32>
    %231 = vector.broadcast %43 : f32 to vector<1x256xf32>
    %232 = arith.mulf %231, %147 : vector<1x256xf32>
    %233 = arith.addf %230, %232 : vector<1x256xf32>
    %234 = vector.broadcast %92 : f32 to vector<1x256xf32>
    %235 = arith.mulf %234, %148 : vector<1x256xf32>
    %236 = arith.addf %233, %235 : vector<1x256xf32>
    %237 = vector.broadcast %44 : f32 to vector<1x256xf32>
    %238 = arith.mulf %237, %151 : vector<1x256xf32>
    %239 = arith.addf %236, %238 : vector<1x256xf32>
    %240 = vector.broadcast %93 : f32 to vector<1x256xf32>
    %241 = arith.mulf %240, %153 : vector<1x256xf32>
    %242 = arith.addf %239, %241 : vector<1x256xf32>
    %243 = vector.broadcast %45 : f32 to vector<1x256xf32>
    %244 = arith.mulf %243, %156 : vector<1x256xf32>
    %245 = arith.addf %242, %244 : vector<1x256xf32>
    %246 = vector.broadcast %94 : f32 to vector<1x256xf32>
    %247 = arith.mulf %246, %158 : vector<1x256xf32>
    %248 = arith.addf %245, %247 : vector<1x256xf32>
    %249 = vector.broadcast %46 : f32 to vector<1x256xf32>
    %250 = arith.mulf %249, %161 : vector<1x256xf32>
    %251 = arith.addf %248, %250 : vector<1x256xf32>
    %252 = vector.broadcast %95 : f32 to vector<1x256xf32>
    %253 = arith.mulf %252, %163 : vector<1x256xf32>
    %254 = arith.addf %251, %253 : vector<1x256xf32>
    %c1_43 = arith.constant 1 : index
    %c0_44 = arith.constant 0 : index
    %255 = vector.load %arg7[%c1_43, %c0_44] : memref<7x256xf32, #tpu.memory_space<vmem>>, vector<1x256xf32>
    %c32_i32 = arith.constant 32 : i32
    %256 = tpu.dynamic_rotate %254 by %c32_i32 dim 1 : vector<1x256xf32>, i32 -> vector<1x256xf32>
    %257 = arith.mulf %256, %255 : vector<1x256xf32>
    %258 = arith.addf %211, %257 : vector<1x256xf32>
    %cst_45 = arith.constant 0.000000e+00 : f32
    %259 = vector.broadcast %cst_45 : f32 to vector<1x256xf32>
    %260 = vector.broadcast %47 : f32 to vector<1x256xf32>
    %261 = arith.mulf %260, %133 : vector<1x256xf32>
    %262 = arith.addf %259, %261 : vector<1x256xf32>
    %263 = vector.broadcast %96 : f32 to vector<1x256xf32>
    %264 = arith.mulf %263, %135 : vector<1x256xf32>
    %265 = arith.addf %262, %264 : vector<1x256xf32>
    %266 = vector.broadcast %48 : f32 to vector<1x256xf32>
    %267 = arith.mulf %266, %138 : vector<1x256xf32>
    %268 = arith.addf %265, %267 : vector<1x256xf32>
    %269 = vector.broadcast %97 : f32 to vector<1x256xf32>
    %270 = arith.mulf %269, %140 : vector<1x256xf32>
    %271 = arith.addf %268, %270 : vector<1x256xf32>
    %272 = vector.broadcast %49 : f32 to vector<1x256xf32>
    %273 = arith.mulf %272, %143 : vector<1x256xf32>
    %274 = arith.addf %271, %273 : vector<1x256xf32>
    %275 = vector.broadcast %98 : f32 to vector<1x256xf32>
    %276 = arith.mulf %275, %145 : vector<1x256xf32>
    %277 = arith.addf %274, %276 : vector<1x256xf32>
    %278 = vector.broadcast %50 : f32 to vector<1x256xf32>
    %279 = arith.mulf %278, %147 : vector<1x256xf32>
    %280 = arith.addf %277, %279 : vector<1x256xf32>
    %281 = vector.broadcast %99 : f32 to vector<1x256xf32>
    %282 = arith.mulf %281, %148 : vector<1x256xf32>
    %283 = arith.addf %280, %282 : vector<1x256xf32>
    %284 = vector.broadcast %51 : f32 to vector<1x256xf32>
    %285 = arith.mulf %284, %151 : vector<1x256xf32>
    %286 = arith.addf %283, %285 : vector<1x256xf32>
    %287 = vector.broadcast %100 : f32 to vector<1x256xf32>
    %288 = arith.mulf %287, %153 : vector<1x256xf32>
    %289 = arith.addf %286, %288 : vector<1x256xf32>
    %290 = vector.broadcast %52 : f32 to vector<1x256xf32>
    %291 = arith.mulf %290, %156 : vector<1x256xf32>
    %292 = arith.addf %289, %291 : vector<1x256xf32>
    %293 = vector.broadcast %101 : f32 to vector<1x256xf32>
    %294 = arith.mulf %293, %158 : vector<1x256xf32>
    %295 = arith.addf %292, %294 : vector<1x256xf32>
    %296 = vector.broadcast %53 : f32 to vector<1x256xf32>
    %297 = arith.mulf %296, %161 : vector<1x256xf32>
    %298 = arith.addf %295, %297 : vector<1x256xf32>
    %299 = vector.broadcast %102 : f32 to vector<1x256xf32>
    %300 = arith.mulf %299, %163 : vector<1x256xf32>
    %301 = arith.addf %298, %300 : vector<1x256xf32>
    %c2_46 = arith.constant 2 : index
    %c0_47 = arith.constant 0 : index
    %302 = vector.load %arg7[%c2_46, %c0_47] : memref<7x256xf32, #tpu.memory_space<vmem>>, vector<1x256xf32>
    %c16_i32 = arith.constant 16 : i32
    %303 = tpu.dynamic_rotate %301 by %c16_i32 dim 1 : vector<1x256xf32>, i32 -> vector<1x256xf32>
    %304 = arith.mulf %303, %302 : vector<1x256xf32>
    %305 = arith.addf %258, %304 : vector<1x256xf32>
    %cst_48 = arith.constant 0.000000e+00 : f32
    %306 = vector.broadcast %cst_48 : f32 to vector<1x256xf32>
    %307 = vector.broadcast %54 : f32 to vector<1x256xf32>
    %308 = arith.mulf %307, %133 : vector<1x256xf32>
    %309 = arith.addf %306, %308 : vector<1x256xf32>
    %310 = vector.broadcast %103 : f32 to vector<1x256xf32>
    %311 = arith.mulf %310, %135 : vector<1x256xf32>
    %312 = arith.addf %309, %311 : vector<1x256xf32>
    %313 = vector.broadcast %55 : f32 to vector<1x256xf32>
    %314 = arith.mulf %313, %138 : vector<1x256xf32>
    %315 = arith.addf %312, %314 : vector<1x256xf32>
    %316 = vector.broadcast %104 : f32 to vector<1x256xf32>
    %317 = arith.mulf %316, %140 : vector<1x256xf32>
    %318 = arith.addf %315, %317 : vector<1x256xf32>
    %319 = vector.broadcast %56 : f32 to vector<1x256xf32>
    %320 = arith.mulf %319, %143 : vector<1x256xf32>
    %321 = arith.addf %318, %320 : vector<1x256xf32>
    %322 = vector.broadcast %105 : f32 to vector<1x256xf32>
    %323 = arith.mulf %322, %145 : vector<1x256xf32>
    %324 = arith.addf %321, %323 : vector<1x256xf32>
    %325 = vector.broadcast %57 : f32 to vector<1x256xf32>
    %326 = arith.mulf %325, %147 : vector<1x256xf32>
    %327 = arith.addf %324, %326 : vector<1x256xf32>
    %328 = vector.broadcast %106 : f32 to vector<1x256xf32>
    %329 = arith.mulf %328, %148 : vector<1x256xf32>
    %330 = arith.addf %327, %329 : vector<1x256xf32>
    %331 = vector.broadcast %58 : f32 to vector<1x256xf32>
    %332 = arith.mulf %331, %151 : vector<1x256xf32>
    %333 = arith.addf %330, %332 : vector<1x256xf32>
    %334 = vector.broadcast %107 : f32 to vector<1x256xf32>
    %335 = arith.mulf %334, %153 : vector<1x256xf32>
    %336 = arith.addf %333, %335 : vector<1x256xf32>
    %337 = vector.broadcast %59 : f32 to vector<1x256xf32>
    %338 = arith.mulf %337, %156 : vector<1x256xf32>
    %339 = arith.addf %336, %338 : vector<1x256xf32>
    %340 = vector.broadcast %108 : f32 to vector<1x256xf32>
    %341 = arith.mulf %340, %158 : vector<1x256xf32>
    %342 = arith.addf %339, %341 : vector<1x256xf32>
    %343 = vector.broadcast %60 : f32 to vector<1x256xf32>
    %344 = arith.mulf %343, %161 : vector<1x256xf32>
    %345 = arith.addf %342, %344 : vector<1x256xf32>
    %346 = vector.broadcast %109 : f32 to vector<1x256xf32>
    %347 = arith.mulf %346, %163 : vector<1x256xf32>
    %348 = arith.addf %345, %347 : vector<1x256xf32>
    %c3_49 = arith.constant 3 : index
    %c0_50 = arith.constant 0 : index
    %349 = vector.load %arg7[%c3_49, %c0_50] : memref<7x256xf32, #tpu.memory_space<vmem>>, vector<1x256xf32>
    %350 = arith.mulf %348, %349 : vector<1x256xf32>
    %351 = arith.addf %305, %350 : vector<1x256xf32>
    %cst_51 = arith.constant 0.000000e+00 : f32
    %352 = vector.broadcast %cst_51 : f32 to vector<1x256xf32>
    %353 = vector.broadcast %61 : f32 to vector<1x256xf32>
    %354 = arith.mulf %353, %133 : vector<1x256xf32>
    %355 = arith.addf %352, %354 : vector<1x256xf32>
    %356 = vector.broadcast %110 : f32 to vector<1x256xf32>
    %357 = arith.mulf %356, %135 : vector<1x256xf32>
    %358 = arith.addf %355, %357 : vector<1x256xf32>
    %359 = vector.broadcast %62 : f32 to vector<1x256xf32>
    %360 = arith.mulf %359, %138 : vector<1x256xf32>
    %361 = arith.addf %358, %360 : vector<1x256xf32>
    %362 = vector.broadcast %111 : f32 to vector<1x256xf32>
    %363 = arith.mulf %362, %140 : vector<1x256xf32>
    %364 = arith.addf %361, %363 : vector<1x256xf32>
    %365 = vector.broadcast %63 : f32 to vector<1x256xf32>
    %366 = arith.mulf %365, %143 : vector<1x256xf32>
    %367 = arith.addf %364, %366 : vector<1x256xf32>
    %368 = vector.broadcast %112 : f32 to vector<1x256xf32>
    %369 = arith.mulf %368, %145 : vector<1x256xf32>
    %370 = arith.addf %367, %369 : vector<1x256xf32>
    %371 = vector.broadcast %64 : f32 to vector<1x256xf32>
    %372 = arith.mulf %371, %147 : vector<1x256xf32>
    %373 = arith.addf %370, %372 : vector<1x256xf32>
    %374 = vector.broadcast %113 : f32 to vector<1x256xf32>
    %375 = arith.mulf %374, %148 : vector<1x256xf32>
    %376 = arith.addf %373, %375 : vector<1x256xf32>
    %377 = vector.broadcast %65 : f32 to vector<1x256xf32>
    %378 = arith.mulf %377, %151 : vector<1x256xf32>
    %379 = arith.addf %376, %378 : vector<1x256xf32>
    %380 = vector.broadcast %114 : f32 to vector<1x256xf32>
    %381 = arith.mulf %380, %153 : vector<1x256xf32>
    %382 = arith.addf %379, %381 : vector<1x256xf32>
    %383 = vector.broadcast %66 : f32 to vector<1x256xf32>
    %384 = arith.mulf %383, %156 : vector<1x256xf32>
    %385 = arith.addf %382, %384 : vector<1x256xf32>
    %386 = vector.broadcast %115 : f32 to vector<1x256xf32>
    %387 = arith.mulf %386, %158 : vector<1x256xf32>
    %388 = arith.addf %385, %387 : vector<1x256xf32>
    %389 = vector.broadcast %67 : f32 to vector<1x256xf32>
    %390 = arith.mulf %389, %161 : vector<1x256xf32>
    %391 = arith.addf %388, %390 : vector<1x256xf32>
    %392 = vector.broadcast %116 : f32 to vector<1x256xf32>
    %393 = arith.mulf %392, %163 : vector<1x256xf32>
    %394 = arith.addf %391, %393 : vector<1x256xf32>
    %c4_52 = arith.constant 4 : index
    %c0_53 = arith.constant 0 : index
    %395 = vector.load %arg7[%c4_52, %c0_53] : memref<7x256xf32, #tpu.memory_space<vmem>>, vector<1x256xf32>
    %c240_i32 = arith.constant 240 : i32
    %396 = tpu.dynamic_rotate %394 by %c240_i32 dim 1 : vector<1x256xf32>, i32 -> vector<1x256xf32>
    %397 = arith.mulf %396, %395 : vector<1x256xf32>
    %398 = arith.addf %351, %397 : vector<1x256xf32>
    %cst_54 = arith.constant 0.000000e+00 : f32
    %399 = vector.broadcast %cst_54 : f32 to vector<1x256xf32>
    %400 = vector.broadcast %68 : f32 to vector<1x256xf32>
    %401 = arith.mulf %400, %133 : vector<1x256xf32>
    %402 = arith.addf %399, %401 : vector<1x256xf32>
    %403 = vector.broadcast %117 : f32 to vector<1x256xf32>
    %404 = arith.mulf %403, %135 : vector<1x256xf32>
    %405 = arith.addf %402, %404 : vector<1x256xf32>
    %406 = vector.broadcast %69 : f32 to vector<1x256xf32>
    %407 = arith.mulf %406, %138 : vector<1x256xf32>
    %408 = arith.addf %405, %407 : vector<1x256xf32>
    %409 = vector.broadcast %118 : f32 to vector<1x256xf32>
    %410 = arith.mulf %409, %140 : vector<1x256xf32>
    %411 = arith.addf %408, %410 : vector<1x256xf32>
    %412 = vector.broadcast %70 : f32 to vector<1x256xf32>
    %413 = arith.mulf %412, %143 : vector<1x256xf32>
    %414 = arith.addf %411, %413 : vector<1x256xf32>
    %415 = vector.broadcast %119 : f32 to vector<1x256xf32>
    %416 = arith.mulf %415, %145 : vector<1x256xf32>
    %417 = arith.addf %414, %416 : vector<1x256xf32>
    %418 = vector.broadcast %71 : f32 to vector<1x256xf32>
    %419 = arith.mulf %418, %147 : vector<1x256xf32>
    %420 = arith.addf %417, %419 : vector<1x256xf32>
    %421 = vector.broadcast %120 : f32 to vector<1x256xf32>
    %422 = arith.mulf %421, %148 : vector<1x256xf32>
    %423 = arith.addf %420, %422 : vector<1x256xf32>
    %424 = vector.broadcast %72 : f32 to vector<1x256xf32>
    %425 = arith.mulf %424, %151 : vector<1x256xf32>
    %426 = arith.addf %423, %425 : vector<1x256xf32>
    %427 = vector.broadcast %121 : f32 to vector<1x256xf32>
    %428 = arith.mulf %427, %153 : vector<1x256xf32>
    %429 = arith.addf %426, %428 : vector<1x256xf32>
    %430 = vector.broadcast %73 : f32 to vector<1x256xf32>
    %431 = arith.mulf %430, %156 : vector<1x256xf32>
    %432 = arith.addf %429, %431 : vector<1x256xf32>
    %433 = vector.broadcast %122 : f32 to vector<1x256xf32>
    %434 = arith.mulf %433, %158 : vector<1x256xf32>
    %435 = arith.addf %432, %434 : vector<1x256xf32>
    %436 = vector.broadcast %74 : f32 to vector<1x256xf32>
    %437 = arith.mulf %436, %161 : vector<1x256xf32>
    %438 = arith.addf %435, %437 : vector<1x256xf32>
    %439 = vector.broadcast %123 : f32 to vector<1x256xf32>
    %440 = arith.mulf %439, %163 : vector<1x256xf32>
    %441 = arith.addf %438, %440 : vector<1x256xf32>
    %c5_55 = arith.constant 5 : index
    %c0_56 = arith.constant 0 : index
    %442 = vector.load %arg7[%c5_55, %c0_56] : memref<7x256xf32, #tpu.memory_space<vmem>>, vector<1x256xf32>
    %c224_i32 = arith.constant 224 : i32
    %443 = tpu.dynamic_rotate %441 by %c224_i32 dim 1 : vector<1x256xf32>, i32 -> vector<1x256xf32>
    %444 = arith.mulf %443, %442 : vector<1x256xf32>
    %445 = arith.addf %398, %444 : vector<1x256xf32>
    %cst_57 = arith.constant 0.000000e+00 : f32
    %446 = vector.broadcast %cst_57 : f32 to vector<1x256xf32>
    %447 = vector.broadcast %75 : f32 to vector<1x256xf32>
    %448 = arith.mulf %447, %133 : vector<1x256xf32>
    %449 = arith.addf %446, %448 : vector<1x256xf32>
    %450 = vector.broadcast %124 : f32 to vector<1x256xf32>
    %451 = arith.mulf %450, %135 : vector<1x256xf32>
    %452 = arith.addf %449, %451 : vector<1x256xf32>
    %453 = vector.broadcast %76 : f32 to vector<1x256xf32>
    %454 = arith.mulf %453, %138 : vector<1x256xf32>
    %455 = arith.addf %452, %454 : vector<1x256xf32>
    %456 = vector.broadcast %125 : f32 to vector<1x256xf32>
    %457 = arith.mulf %456, %140 : vector<1x256xf32>
    %458 = arith.addf %455, %457 : vector<1x256xf32>
    %459 = vector.broadcast %77 : f32 to vector<1x256xf32>
    %460 = arith.mulf %459, %143 : vector<1x256xf32>
    %461 = arith.addf %458, %460 : vector<1x256xf32>
    %462 = vector.broadcast %126 : f32 to vector<1x256xf32>
    %463 = arith.mulf %462, %145 : vector<1x256xf32>
    %464 = arith.addf %461, %463 : vector<1x256xf32>
    %465 = vector.broadcast %78 : f32 to vector<1x256xf32>
    %466 = arith.mulf %465, %147 : vector<1x256xf32>
    %467 = arith.addf %464, %466 : vector<1x256xf32>
    %468 = vector.broadcast %127 : f32 to vector<1x256xf32>
    %469 = arith.mulf %468, %148 : vector<1x256xf32>
    %470 = arith.addf %467, %469 : vector<1x256xf32>
    %471 = vector.broadcast %79 : f32 to vector<1x256xf32>
    %472 = arith.mulf %471, %151 : vector<1x256xf32>
    %473 = arith.addf %470, %472 : vector<1x256xf32>
    %474 = vector.broadcast %128 : f32 to vector<1x256xf32>
    %475 = arith.mulf %474, %153 : vector<1x256xf32>
    %476 = arith.addf %473, %475 : vector<1x256xf32>
    %477 = vector.broadcast %80 : f32 to vector<1x256xf32>
    %478 = arith.mulf %477, %156 : vector<1x256xf32>
    %479 = arith.addf %476, %478 : vector<1x256xf32>
    %480 = vector.broadcast %129 : f32 to vector<1x256xf32>
    %481 = arith.mulf %480, %158 : vector<1x256xf32>
    %482 = arith.addf %479, %481 : vector<1x256xf32>
    %483 = vector.broadcast %81 : f32 to vector<1x256xf32>
    %484 = arith.mulf %483, %161 : vector<1x256xf32>
    %485 = arith.addf %482, %484 : vector<1x256xf32>
    %486 = vector.broadcast %130 : f32 to vector<1x256xf32>
    %487 = arith.mulf %486, %163 : vector<1x256xf32>
    %488 = arith.addf %485, %487 : vector<1x256xf32>
    %c6_58 = arith.constant 6 : index
    %c0_59 = arith.constant 0 : index
    %489 = vector.load %arg7[%c6_58, %c0_59] : memref<7x256xf32, #tpu.memory_space<vmem>>, vector<1x256xf32>
    %c208_i32 = arith.constant 208 : i32
    %490 = tpu.dynamic_rotate %488 by %c208_i32 dim 1 : vector<1x256xf32>, i32 -> vector<1x256xf32>
    %491 = arith.mulf %490, %489 : vector<1x256xf32>
    %492 = arith.addf %445, %491 : vector<1x256xf32>
    %493 = arith.negf %492 : vector<1x256xf32>
    %494 = math.exp %493 : vector<1x256xf32>
    %cst_60 = arith.constant 1.000000e+00 : f32
    %495 = vector.broadcast %cst_60 : f32 to vector<1x256xf32>
    %496 = arith.addf %495, %494 : vector<1x256xf32>
    %497 = arith.divf %495, %496 : vector<1x256xf32>
    %498 = vector.broadcast %497 : vector<1x256xf32> to vector<16x256xf32>
    %499 = arith.mulf %26, %498 : vector<16x256xf32>
    %c0_61 = arith.constant 0 : index
    %c0_62 = arith.constant 0 : index
    %c0_63 = arith.constant 0 : index
    %500 = vector.load %arg9[%c0_61, %c0_62, %c0_63] : memref<1x16x256xf32, #tpu.memory_space<vmem>>, vector<1x16x256xf32>
    %501 = vector.shape_cast %500 : vector<1x16x256xf32> to vector<16x256xf32>
    %502 = vector.shape_cast %499 : vector<16x256xf32> to vector<1x16x256xf32>
    tpu.vector_store %arg9[%c0_61, %c0_62, %c0_63], %502 {strides = array<i32>} : memref<1x16x256xf32, #tpu.memory_space<vmem>>, vector<1x16x256xf32>,
    return
  }
  func.func @transform_0(%arg0: i32) -> (i32, i32, i32) {
    %c0_i32 = arith.constant 0 : i32
    %c0_i32_0 = arith.constant 0 : i32
    %c0_i32_1 = arith.constant 0 : i32
    return %arg0, %c0_i32, %c0_i32_0 : i32, i32, i32
  }
  func.func @transform_1(%arg0: i32) -> (i32, i32) {
    %c0_i32 = arith.constant 0 : i32
    %c0_i32_0 = arith.constant 0 : i32
    %c0_i32_1 = arith.constant 0 : i32
    return %c0_i32, %c0_i32_0 : i32, i32
  }
  func.func @transform_2(%arg0: i32) -> (i32, i32) {
    %c0_i32 = arith.constant 0 : i32
    %c0_i32_0 = arith.constant 0 : i32
    %c0_i32_1 = arith.constant 0 : i32
    return %c0_i32, %c0_i32_0 : i32, i32
  }
  func.func @transform_3(%arg0: i32) -> (i32, i32) {
    %c0_i32 = arith.constant 0 : i32
    %c0_i32_0 = arith.constant 0 : i32
    %c0_i32_1 = arith.constant 0 : i32
    return %c0_i32, %c0_i32_0 : i32, i32
  }
  func.func @transform_4(%arg0: i32) -> (i32, i32) {
    %c0_i32 = arith.constant 0 : i32
    %c0_i32_0 = arith.constant 0 : i32
    %c0_i32_1 = arith.constant 0 : i32
    return %c0_i32, %c0_i32_0 : i32, i32
  }
  func.func @transform_5(%arg0: i32) -> (i32, i32) {
    %c0_i32 = arith.constant 0 : i32
    %c0_i32_0 = arith.constant 0 : i32
    %c0_i32_1 = arith.constant 0 : i32
    return %c0_i32, %c0_i32_0 : i32, i32
  }
  func.func @transform_6(%arg0: i32) -> (i32, i32) {
    %c0_i32 = arith.constant 0 : i32
    %c0_i32_0 = arith.constant 0 : i32
    %c0_i32_1 = arith.constant 0 : i32
    return %c0_i32, %c0_i32_0 : i32, i32
  }
  func.func @transform_7(%arg0: i32) -> i32 {
    %c0_i32 = arith.constant 0 : i32
    %c0_i32_0 = arith.constant 0 : i32
    return %c0_i32 : i32
  }
  func.func @transform_8(%arg0: i32) -> (i32, i32, i32) {
    %c0_i32 = arith.constant 0 : i32
    %c0_i32_0 = arith.constant 0 : i32
    %c0_i32_1 = arith.constant 0 : i32
    return %arg0, %c0_i32, %c0_i32_0 : i32, i32, i32
  }
}

</mosaic_0001>

<llo_original>
// kernel: tpu_custom_call.1
$region0: #{tpu_custom_call.1}
  #allocation0 [shape = 'u32[]', space=smem, size = 0x4, offset = 0x4, fixed_abs, tag = 'smem constant byte address 0x4 - core index']
  #allocation1 [shape = 'u32[144,128]{1,0:T(1,128)}', space=vmem, size = 0x12000, scoped, tag = 'internal scratch']
  %s0 = inlined_call_operand.vmem [shape: f32[2,8,256], index: 0, kind: input, shape index: {}]
  %s1 = inlined_call_operand.vmem [shape: f32[16,8], index: 1, kind: input, shape index: {}]
  %s2 = inlined_call_operand.vmem [shape: f32[16,1], index: 2, kind: input, shape index: {}]
  %s3 = inlined_call_operand.vmem [shape: f32[16,16], index: 3, kind: input, shape index: {}]
  %s4 = inlined_call_operand.vmem [shape: f32[16,1], index: 4, kind: input, shape index: {}]
  %s5 = inlined_call_operand.vmem [shape: f32[7,256], index: 5, kind: input, shape index: {}]
  %s6 = inlined_call_operand.vmem [shape: f32[7,256], index: 6, kind: input, shape index: {}]
  %s7 = inlined_call_operand.vmem [shape: f32[98], index: 7, kind: input, shape index: {}]
  %s8 = inlined_call_operand.hbm [shape: f32[2,16,256], index: 8, kind: output, shape index: {}]
  %s9 = sld [smem:[#allocation0]]
  $region69: #{tpu_custom_call.1} parent=0
    _
  %s11 = ssub.s32 1, %s9
  %s12 = scalar_select 0, %s11, %s9
  $region1: #{tpu_custom_call.1} parent=0
    #allocation2 [shape = 'u8[512]{0}', space=smem, size = 0x200, scoped, tag = 'input window, operand 7, single buffered']
    #allocation3 [shape = 's32[2]{0}', space=sflag, size = 0x8, scoped, tag = 'scoped memory for tpu_custom_call.1']
    #allocation4 [shape = 's32[2]{0}', space=sflag, size = 0x8, scoped, tag = 'scoped memory for tpu_custom_call.1']
    #allocation5 [shape = 'u8[32768]{0}', space=vmem, size = 0x8000, scoped, tag = 'output window, operand 0']
    %13 = vsyncpa [#allocation4], 0
    %14 = vsyncpa [#allocation3], 0
    %s15 = scalar_lea.sflag [#allocation3], 1
    %16 = vsyncpa %s15, 0
    loop: start=0, step=1, limit=4
    $region2: #{tpu_custom_call.1} parent=1 // loop_pre_header
      _
    $region3: #{tpu_custom_call.1} parent=1 // loop_header
      %s18 = sphi 0, %s22
      %p19 = scmp.ge.s32.totalorder %s18, 4
      %s28 = sphi 0, %s30
      %s31 = sphi 0, %s28
      %s32 = sphi 0, %s31
      %s48 = sphi 0, %s32
      %s52 = sphi 0, %s52
      %s54 = sphi 0, %s52
      %s55 = sphi 0, %s54
      %s69 = sphi 0, %s55
      %s73 = sphi 0, %s73
      %s75 = sphi 0, %s73
      %s76 = sphi 0, %s75
      %s90 = sphi 0, %s76
      %s94 = sphi 0, %s94
      %s96 = sphi 0, %s94
      %s97 = sphi 0, %s96
      %s111 = sphi 0, %s97
      %s115 = sphi 0, %s115
      %s117 = sphi 0, %s115
      %s118 = sphi 0, %s117
      %s132 = sphi 0, %s118
      %s136 = sphi 0, %s136
      %s138 = sphi 0, %s136
      %s139 = sphi 0, %s138
      %s153 = sphi 0, %s139
      %s157 = sphi 0, %s157
      %s159 = sphi 0, %s157
      %s160 = sphi 0, %s159
      %s174 = sphi 0, %s160
      %s178 = sphi 0, %s178
      %s180 = sphi 0, %s178
      %s181 = sphi 0, %s180
      %s195 = sphi 0, %s181
      %s201 = sphi 0, %s203
      %s204 = sphi 0, %s201
      %s205 = sphi 0, %s204
      %s221 = sphi 0, %s205
    $region4: #{tpu_custom_call.1} parent=1 // loop_header_branch
      %21 = sbr.rel (%p19) target = $region8
    $region5: #{tpu_custom_call.1} parent=1 // loop_body
      %s23 = ssub.s32 %s18, 1
      %s24 = ssub.s32 %s18, 2
      %s25 = sadd.s32 %s18, 1
      %s26 = ssub.s32 %s18, %s25
      %p27 = scmp.eq.s32.totalorder %s26, 0
      %s29 = sadd.s32 %s28, 1
      %s30 = scalar_select %p27, %s28, %s29
      %p33 = pneg %p27
      %p34 = scmp.eq.s32.totalorder %s18, 1
      %p35 = por %p33, %p34
      %p36 = scmp.ne.s32.totalorder %s28, %s31
      %p37 = scmp.eq.s32.totalorder %s18, 0
      %p38 = por %p36, %p37
      %p39 = scmp.ne.s32.totalorder %s28, %s31
      %p40 = scmp.eq.s32.totalorder %s23, 1
      %p41 = por %p39, %p40
      %p42 = scmp.ne.s32.totalorder %s31, %s32
      %p43 = scmp.eq.s32.totalorder %s23, 0
      %p44 = por %p42, %p43
      %p45 = scmp.ne.s32.totalorder %s31, %s32
      %p46 = scmp.eq.s32.totalorder %s24, 1
      %p47 = por %p45, %p46
      %p49 = scmp.ne.s32.totalorder %s32, %s48
      %p50 = scmp.eq.s32.totalorder %s24, 0
      %p51 = por %p49, %p50
      %s53 = sadd.s32 %s52, 1
      %p56 = scmp.eq.s32.totalorder %s18, 1
      %p57 = scmp.ne.s32.totalorder %s52, %s54
      %p58 = scmp.eq.s32.totalorder %s18, 0
      %p59 = por %p57, %p58
      %p60 = scmp.ne.s32.totalorder %s52, %s54
      %p61 = scmp.eq.s32.totalorder %s23, 1
      %p62 = por %p60, %p61
      %p63 = scmp.ne.s32.totalorder %s54, %s55
      %p64 = scmp.eq.s32.totalorder %s23, 0
      %p65 = por %p63, %p64
      %p66 = scmp.ne.s32.totalorder %s54, %s55
      %p67 = scmp.eq.s32.totalorder %s24, 1
      %p68 = por %p66, %p67
      %p70 = scmp.ne.s32.totalorder %s55, %s69
      %p71 = scmp.eq.s32.totalorder %s24, 0
      %p72 = por %p70, %p71
      %s74 = sadd.s32 %s73, 1
      %p77 = scmp.eq.s32.totalorder %s18, 1
      %p78 = scmp.ne.s32.totalorder %s73, %s75
      %p79 = scmp.eq.s32.totalorder %s18, 0
      %p80 = por %p78, %p79
      %p81 = scmp.ne.s32.totalorder %s73, %s75
      %p82 = scmp.eq.s32.totalorder %s23, 1
      %p83 = por %p81, %p82
      %p84 = scmp.ne.s32.totalorder %s75, %s76
      %p85 = scmp.eq.s32.totalorder %s23, 0
      %p86 = por %p84, %p85
      %p87 = scmp.ne.s32.totalorder %s75, %s76
      %p88 = scmp.eq.s32.totalorder %s24, 1
      %p89 = por %p87, %p88
      %p91 = scmp.ne.s32.totalorder %s76, %s90
      %p92 = scmp.eq.s32.totalorder %s24, 0
      %p93 = por %p91, %p92
      %s95 = sadd.s32 %s94, 1
      %p98 = scmp.eq.s32.totalorder %s18, 1
      %p99 = scmp.ne.s32.totalorder %s94, %s96
      %p100 = scmp.eq.s32.totalorder %s18, 0
      %p101 = por %p99, %p100
      %p102 = scmp.ne.s32.totalorder %s94, %s96
      %p103 = scmp.eq.s32.totalorder %s23, 1
      %p104 = por %p102, %p103
      %p105 = scmp.ne.s32.totalorder %s96, %s97
      %p106 = scmp.eq.s32.totalorder %s23, 0
      %p107 = por %p105, %p106
      %p108 = scmp.ne.s32.totalorder %s96, %s97
      %p109 = scmp.eq.s32.totalorder %s24, 1
      %p110 = por %p108, %p109
      %p112 = scmp.ne.s32.totalorder %s97, %s111
      %p113 = scmp.eq.s32.totalorder %s24, 0
      %p114 = por %p112, %p113
      %s116 = sadd.s32 %s115, 1
      %p119 = scmp.eq.s32.totalorder %s18, 1
      %p120 = scmp.ne.s32.totalorder %s115, %s117
      %p121 = scmp.eq.s32.totalorder %s18, 0
      %p122 = por %p120, %p121
      %p123 = scmp.ne.s32.totalorder %s115, %s117
      %p124 = scmp.eq.s32.totalorder %s23, 1
      %p125 = por %p123, %p124
      %p126 = scmp.ne.s32.totalorder %s117, %s118
      %p127 = scmp.eq.s32.totalorder %s23, 0
      %p128 = por %p126, %p127
      %p129 = scmp.ne.s32.totalorder %s117, %s118
      %p130 = scmp.eq.s32.totalorder %s24, 1
      %p131 = por %p129, %p130
      %p133 = scmp.ne.s32.totalorder %s118, %s132
      %p134 = scmp.eq.s32.totalorder %s24, 0
      %p135 = por %p133, %p134
      %s137 = sadd.s32 %s136, 1
      %p140 = scmp.eq.s32.totalorder %s18, 1
      %p141 = scmp.ne.s32.totalorder %s136, %s138
      %p142 = scmp.eq.s32.totalorder %s18, 0
      %p143 = por %p141, %p142
      %p144 = scmp.ne.s32.totalorder %s136, %s138
      %p145 = scmp.eq.s32.totalorder %s23, 1
      %p146 = por %p144, %p145
      %p147 = scmp.ne.s32.totalorder %s138, %s139
      %p148 = scmp.eq.s32.totalorder %s23, 0
      %p149 = por %p147, %p148
      %p150 = scmp.ne.s32.totalorder %s138, %s139
      %p151 = scmp.eq.s32.totalorder %s24, 1
      %p152 = por %p150, %p151
      %p154 = scmp.ne.s32.totalorder %s139, %s153
      %p155 = scmp.eq.s32.totalorder %s24, 0
      %p156 = por %p154, %p155
      %s158 = sadd.s32 %s157, 1
      %p161 = scmp.eq.s32.totalorder %s18, 1
      %p162 = scmp.ne.s32.totalorder %s157, %s159
      %p163 = scmp.eq.s32.totalorder %s18, 0
      %p164 = por %p162, %p163
      %p165 = scmp.ne.s32.totalorder %s157, %s159
      %p166 = scmp.eq.s32.totalorder %s23, 1
      %p167 = por %p165, %p166
      %p168 = scmp.ne.s32.totalorder %s159, %s160
      %p169 = scmp.eq.s32.totalorder %s23, 0
      %p170 = por %p168, %p169
      %p171 = scmp.ne.s32.totalorder %s159, %s160
      %p172 = scmp.eq.s32.totalorder %s24, 1
      %p173 = por %p171, %p172
      %p175 = scmp.ne.s32.totalorder %s160, %s174
      %p176 = scmp.eq.s32.totalorder %s24, 0
      %p177 = por %p175, %p176
      %s179 = sadd.s32 %s178, 1
      %p182 = scmp.eq.s32.totalorder %s18, 1
      %p183 = scmp.ne.s32.totalorder %s178, %s180
      %p184 = scmp.eq.s32.totalorder %s18, 0
      %p185 = por %p183, %p184
      %p186 = scmp.ne.s32.totalorder %s178, %s180
      %p187 = scmp.eq.s32.totalorder %s23, 1
      %p188 = por %p186, %p187
      %p189 = scmp.ne.s32.totalorder %s180, %s181
      %p190 = scmp.eq.s32.totalorder %s23, 0
      %p191 = por %p189, %p190
      %p192 = scmp.ne.s32.totalorder %s180, %s181
      %p193 = scmp.eq.s32.totalorder %s24, 1
      %p194 = por %p192, %p193
      %p196 = scmp.ne.s32.totalorder %s181, %s195
      %p197 = scmp.eq.s32.totalorder %s24, 0
      %p198 = por %p196, %p197
      %s199 = ssub.s32 %s18, %s25
      %p200 = scmp.eq.s32.totalorder %s199, 0
      %s202 = sadd.s32 %s201, 1
      %s203 = scalar_select %p200, %s201, %s202
      %p206 = pneg %p200
      %p207 = scmp.eq.s32.totalorder %s18, 1
      %p208 = por %p206, %p207
      %p209 = scmp.ne.s32.totalorder %s201, %s204
      %p210 = scmp.eq.s32.totalorder %s18, 0
      %p211 = por %p209, %p210
      %p212 = scmp.ne.s32.totalorder %s201, %s204
      %p213 = scmp.eq.s32.totalorder %s23, 1
      %p214 = por %p212, %p213
      %p215 = scmp.ne.s32.totalorder %s204, %s205
      %p216 = scmp.eq.s32.totalorder %s23, 0
      %p217 = por %p215, %p216
      %p218 = scmp.ne.s32.totalorder %s204, %s205
      %p219 = scmp.eq.s32.totalorder %s24, 1
      %p220 = por %p218, %p219
      %p222 = scmp.ne.s32.totalorder %s205, %s221
      %p223 = scmp.eq.s32.totalorder %s24, 0
      %p224 = por %p222, %p223
      %p225 = scmp.le.s32.totalorder 1, %s18
      %p226 = scmp.lt.s32.totalorder %s18, 3
      %p227 = pnand %p225, %p226
      %p228 = pneg %p227
      // Predicated region
      $region9: #{tpu_custom_call.1} parent=5 // pred_check
        _
      $region10: #{tpu_custom_call.1} parent=5 // pred_check_branch
        %230 = sbr.rel (%p227) target = $region12
      $region11: #{tpu_custom_call.1} parent=5 // pred_region
        %s231 = ssub.s32 %s18, 1
        // Predicated region
        $region13: #{tpu_custom_call.1} parent=11 // pred_check
          %p232 = pneg %p65
        $region14: #{tpu_custom_call.1} parent=11 // pred_check_branch
          %234 = sbr.rel (%p232) target = $region16
        $region15: #{tpu_custom_call.1} parent=11 // pred_region
          _
        $region16: #{tpu_custom_call.1} parent=11 // pred_fallthru
          _
        // Predicated region
        $region17: #{tpu_custom_call.1} parent=11 // pred_check
          %p235 = pneg %p86
        $region18: #{tpu_custom_call.1} parent=11 // pred_check_branch
          %237 = sbr.rel (%p235) target = $region20
        $region19: #{tpu_custom_call.1} parent=11 // pred_region
          _
        $region20: #{tpu_custom_call.1} parent=11 // pred_fallthru
          _
        // Predicated region
        $region21: #{tpu_custom_call.1} parent=11 // pred_check
          %p238 = pneg %p107
        $region22: #{tpu_custom_call.1} parent=11 // pred_check_branch
          %240 = sbr.rel (%p238) target = $region24
        $region23: #{tpu_custom_call.1} parent=11 // pred_region
          _
        $region24: #{tpu_custom_call.1} parent=11 // pred_fallthru
          _
        // Predicated region
        $region25: #{tpu_custom_call.1} parent=11 // pred_check
          %p241 = pneg %p128
        $region26: #{tpu_custom_call.1} parent=11 // pred_check_branch
          %243 = sbr.rel (%p241) target = $region28
        $region27: #{tpu_custom_call.1} parent=11 // pred_region
          _
        $region28: #{tpu_custom_call.1} parent=11 // pred_fallthru
          _
        // Predicated region
        $region29: #{tpu_custom_call.1} parent=11 // pred_check
          %p244 = pneg %p149
        $region30: #{tpu_custom_call.1} parent=11 // pred_check_branch
          %246 = sbr.rel (%p244) target = $region32
        $region31: #{tpu_custom_call.1} parent=11 // pred_region
          _
        $region32: #{tpu_custom_call.1} parent=11 // pred_fallthru
          _
        // Predicated region
        $region33: #{tpu_custom_call.1} parent=11 // pred_check
          %p247 = pneg %p170
        $region34: #{tpu_custom_call.1} parent=11 // pred_check_branch
          %249 = sbr.rel (%p247) target = $region36
        $region35: #{tpu_custom_call.1} parent=11 // pred_region
          _
        $region36: #{tpu_custom_call.1} parent=11 // pred_fallthru
          _
        // Predicated region
        $region37: #{tpu_custom_call.1} parent=11 // pred_check
          %p250 = pneg %p191
        $region38: #{tpu_custom_call.1} parent=11 // pred_check_branch
          %252 = sbr.rel (%p250) target = $region40
        $region39: #{tpu_custom_call.1} parent=11 // pred_region
          %s254 = ssub.s32 16, 16
          %255 = vsyncadd [#allocation4], %s254
          %s257 = sshll.u32 %s7, 4
          %s258 = int_to_ptr.vmem [resolvable:$true] %s257
          %260 = dma.vmem_to_smem %s258, 16, [#allocation2], [#allocation4]
        $region40: #{tpu_custom_call.1} parent=11 // pred_fallthru
          _
      $region12: #{tpu_custom_call.1} parent=5 // pred_fallthru
        _
      %p261 = scmp.lt.s32.totalorder %s18, 2
      // Predicated region
      $region41: #{tpu_custom_call.1} parent=5 // pred_check
        %p262 = pneg %p261
      $region42: #{tpu_custom_call.1} parent=5 // pred_check_branch
        %264 = sbr.rel (%p262) target = $region44
      $region43: #{tpu_custom_call.1} parent=5 // pred_region
        // Predicated region
        $region45: #{tpu_custom_call.1} parent=43 // pred_check
          %p265 = pneg %p38
        $region46: #{tpu_custom_call.1} parent=43 // pred_check_branch
          %267 = sbr.rel (%p265) target = $region48
        $region47: #{tpu_custom_call.1} parent=43 // pred_region
          %p268 = scmp.lt.s32.totalorder %s18, 1
          %s269 = scalar_select %p268, %s18, 1
          %s270 = smul.addr %s269, 2
          %s271 = smul.addr %s270, 8
          %s272 = scalar_lea.vmem %s0, %s271
        $region48: #{tpu_custom_call.1} parent=43 // pred_fallthru
          _
      $region44: #{tpu_custom_call.1} parent=5 // pred_fallthru
        _
      %p273 = scmp.le.s32.totalorder 1, %s18
      %p274 = scmp.lt.s32.totalorder %s18, 3
      %p275 = pnand %p273, %p274
      %p276 = pneg %p275
      // Predicated region
      $region49: #{tpu_custom_call.1} parent=5 // pred_check
        _
      $region50: #{tpu_custom_call.1} parent=5 // pred_check_branch
        %278 = sbr.rel (%p275) target = $region52
      $region51: #{tpu_custom_call.1} parent=5 // pred_region
        %s279 = ssub.s32 %s18, 1
        // Predicated region
        $region53: #{tpu_custom_call.1} parent=51 // pred_check
          %p280 = pneg %p191
        $region54: #{tpu_custom_call.1} parent=51 // pred_check_branch
          %282 = sbr.rel (%p280) target = $region56
        $region55: #{tpu_custom_call.1} parent=51 // pred_region
          %283 = dma.done [#allocation4], 16
        $region56: #{tpu_custom_call.1} parent=51 // pred_fallthru
          _
        %284 = sfence
        %p285 = scmp.lt.s32.totalorder %s23, 1
        %s286 = scalar_select %p285, %s23, 1
        %s287 = smul.addr %s286, 2
        %s288 = smul.addr %s287, 8
        %s289 = scalar_lea.vmem %s0, %s288
        %p290 = pneg %p44
        %p291 = pneg %p41
        %p292 = pneg %p65
        %p293 = pneg %p62
        %p294 = pneg %p86
        %p295 = pneg %p83
        %p296 = pneg %p107
        %p297 = pneg %p104
        %p298 = pneg %p128
        %p299 = pneg %p125
        %p300 = pneg %p149
        %p301 = pneg %p146
        %p302 = pneg %p170
        %p303 = pneg %p167
        %p304 = pneg %p191
        %p305 = pneg %p188
        %p306 = pneg %p217
        %p307 = pneg %p214
        %s308 = sand.u32 %s204, 1
        %s309 = scalar_lea.sflag [#allocation3], %s308
        %s310 = sand.u32 %s204, 1
        %s311 = smul.addr %s310, 32
        %s312 = scalar_lea.vmem [#allocation5], %s311
        %p313 = scmp.lt.s32.totalorder %s23, 1
        %s314 = scalar_select %p313, %s23, 1
        %s315 = smul.addr %s314, 2
        %s316 = smul.addr %s315, 8
        %s317 = scalar_lea.vmem %s0, %s316
        %v319 = vld [vmem:[%s1] sm:$0xff]
        %v320 = vld [vmem:[%s1 + $0x8] sm:$0xff]
        %v321 = vpack.c.bf16 %v320, %v319
        %v322 = vld [vmem:[%s317] sm:$0xff]
        %v323 = vld [vmem:[%s317 + $0x8] sm:$0xff]
        %v324 = vpack.c.bf16 %v322, %v322
        %v325 = vpack.c.bf16 %v323, %v323
        %v326 = vld [vmem:[%s2] sm:$0xff]
        %v327 = vld [vmem:[%s2 + $0x8] sm:$0xff]
        %329 = vset.pattern.permute.xlu0 0
        %330 = vperm.xlu0 %329, %v326
        %v331 = vpop.permute.xlu0 %330
        %334 = vset.pattern.permute.xlu0 0
        %335 = vperm.xlu0 %334, %v327
        %v336 = vpop.permute.xlu0 %335
        %vm338 = vcmask 64512
        %v340 = vsel %vm338, %v321, 0
        %vm342 = vcmask 1043456
        %v344 = vsel %vm342, %v324, 0
        %v347 = vsel %vm342, %v325, 0
        %349 = vmatprep.subr.bf16.mxu0 %v347
        %350 = vmatpush1.bf16.msra.mxu0 %v344
        %351 = vmatprep.subr.bf16.mxu0 0
        %352 = vmatpush1.bf16.msra.mxu0 0
        %353 = vmatprep.subr.bf16.mxu0 0
        %354 = vmatpush1.bf16.msra.mxu0 0
        %355 = vmatprep.subr.bf16.mxu0 0
        %356 = vmatpush1.bf16.msra.mxu0 0
        %357 = vmatprep.subr.bf16.mxu0 0
        %358 = vmatpush1.bf16.msra.mxu0 0
        %359 = vmatprep.subr.bf16.mxu0 0
        %360 = vmatpush1.bf16.msra.mxu0 0
        %361 = vmatprep.subr.bf16.mxu0 0
        %362 = vmatpush1.bf16.msra.mxu0 0
        %363 = vmatprep.subr.bf16.mxu0 0
        %364 = vmatpush1.bf16.msra.mxu0 0
        %365 = vmatprep.subr.bf16.mxu0 0
        %366 = vmatpush1.bf16.msra.mxu0 0
        %367 = vmatprep.subr.bf16.mxu0 0
        %368 = vmatpush1.bf16.msra.mxu0 0
        %369 = vmatprep.subr.bf16.mxu0 0
        %370 = vmatpush1.bf16.msra.mxu0 0
        %371 = vmatprep.subr.bf16.mxu0 0
        %372 = vmatpush1.bf16.msra.mxu0 0
        %373 = vmatprep.subr.bf16.mxu0 0
        %374 = vmatpush1.bf16.msra.mxu0 0
        %375 = vmatprep.subr.bf16.mxu0 0
        %376 = vmatpush1.bf16.msra.mxu0 0
        %377 = vmatprep.subr.bf16.mxu0 0
        %378 = vmatpush1.bf16.msra.mxu0 0
        %379 = vmatprep.subr.bf16.mxu0 0
        %380 = vmatpush1.bf16.msra.mxu0 0
        %381 = vmatprep.mubr.bf16.mxu0 0
        %382 = vmatmul.mubr.bf16.gmra.mrb[0].mxu0 %v340
        %v383 = vpop.f32.mrb[0].mxu0
        %v384 = vadd.f32 %v331, %v383
        %v385 = vpop.f32.mrb[0].mxu0
        %v386 = vadd.f32 %v331, %v385
        %v387 = vpop.f32.mrb[0].mxu0
        %v388 = vadd.f32 %v336, %v387
        %v389 = vpop.f32.mrb[0].mxu0
        %v390 = vadd.f32 %v336, %v389
        %391 = vdwg.mxu0
        %v392 = vadd.f32 %v384, %v386
        %393 = vadd.xlane.f32.xlu0 %v392
        %v394 = vpop.xlane.xlu0 %393
        %v395 = vadd.f32 %v388, %v390
        %396 = vadd.xlane.f32.xlu0 %v395
        %v397 = vpop.xlane.xlu0 %396
        %v398 = vrcp.pop 256.0
        %v399 = vmul.f32 %v394, %v398
        %v400 = vmul.f32 %v397, %v398
        %v401 = vld [vmem:[%s3] sm:$0xff]
        %v402 = vld [vmem:[%s3 + $0x8] sm:$0xff]
        %vm403 = vcmask 130048
        %v405 = vsel %vm403, %v401, 0
        %v408 = vsel %vm403, %v402, 0
        %410 = vmatprep.subr.mxu0 0.0
        %411 = vmatpush1.msra.mxu0 %v399
        %412 = vmatprep.subr.mxu0 0.0
        %413 = vmatpush1.msra.mxu0 %v400
        %414 = vmatprep.subr.mxu0 0.0
        %415 = vmatpush1.msra.mxu0 0.0
        %416 = vmatprep.subr.mxu0 0.0
        %417 = vmatpush1.msra.mxu0 0.0
        %418 = vmatprep.subr.mxu0 0.0
        %419 = vmatpush1.msra.mxu0 0.0
        %420 = vmatprep.subr.mxu0 0.0
        %421 = vmatpush1.msra.mxu0 0.0
        %422 = vmatprep.subr.mxu0 0.0
        %423 = vmatpush1.msra.mxu0 0.0
        %424 = vmatprep.subr.mxu0 0.0
        %425 = vmatpush1.msra.mxu0 0.0
        %426 = vmatprep.subr.mxu0 0.0
        %427 = vmatpush1.msra.mxu0 0.0
        %428 = vmatprep.subr.mxu0 0.0
        %429 = vmatpush1.msra.mxu0 0.0
        %430 = vmatprep.subr.mxu0 0.0
        %431 = vmatpush1.msra.mxu0 0.0
        %432 = vmatprep.subr.mxu0 0.0
        %433 = vmatpush1.msra.mxu0 0.0
        %434 = vmatprep.subr.mxu0 0.0
        %435 = vmatpush1.msra.mxu0 0.0
        %436 = vmatprep.subr.mxu0 0.0
        %437 = vmatpush1.msra.mxu0 0.0
        %438 = vmatprep.subr.mxu0 0.0
        %439 = vmatpush1.msra.mxu0 0.0
        %440 = vmatprep.subr.mxu0 0.0
        %441 = vmatpush1.msra.mxu0 0.0
        %442 = vmatprep.subr.mxu0 0.0
        %443 = vmatpush1.msra.mxu0 0.0
        %444 = vmatprep.subr.mxu0 0.0
        %445 = vmatpush1.msra.mxu0 0.0
        %446 = vmatprep.subr.mxu0 0.0
        %447 = vmatpush1.msra.mxu0 0.0
        %448 = vmatprep.subr.mxu0 0.0
        %449 = vmatpush1.msra.mxu0 0.0
        %450 = vmatprep.subr.mxu0 0.0
        %451 = vmatpush1.msra.mxu0 0.0
        %452 = vmatprep.subr.mxu0 0.0
        %453 = vmatpush1.msra.mxu0 0.0
        %454 = vmatprep.subr.mxu0 0.0
        %455 = vmatpush1.msra.mxu0 0.0
        %456 = vmatprep.subr.mxu0 0.0
        %457 = vmatpush1.msra.mxu0 0.0
        %458 = vmatprep.subr.mxu0 0.0
        %459 = vmatpush1.msra.mxu0 0.0
        %460 = vmatprep.subr.mxu0 0.0
        %461 = vmatpush1.msra.mxu0 0.0
        %462 = vmatprep.subr.mxu0 0.0
        %463 = vmatpush1.msra.mxu0 0.0
        %464 = vmatprep.subr.mxu0 0.0
        %465 = vmatpush1.msra.mxu0 0.0
        %466 = vmatprep.subr.mxu0 0.0
        %467 = vmatpush1.msra.mxu0 0.0
        %468 = vmatprep.subr.mxu0 0.0
        %469 = vmatpush1.msra.mxu0 0.0
        %470 = vmatprep.subr.mxu0 0.0
        %471 = vmatpush1.msra.mxu0 0.0
        %472 = vmatprep.subr.mxu0 0.0
        %473 = vmatpush1.msra.mxu0 0.0
        %474 = vmatprep.mubr.f32.mxu0 0.0
        %475 = vmatmul.mubr.f32.gmra.mrb[0].mxu0 %v405
        %v476 = vpop.f32.mrb[0].mxu0
        %v477 = vadd.f32 0.0, %v476
        %v478 = vpop.f32.mrb[0].mxu0
        %479 = vmatprep.mubr.f32.mxu0 0.0
        %480 = vmatmul.mubr.f32.gmra.mrb[0].mxu0 %v408
        %v481 = vpop.f32.mrb[0].mxu0
        %v482 = vadd.f32 0.0, %v481
        %v483 = vpop.f32.mrb[0].mxu0
        %484 = vdwg.mxu0
        %v485 = vld [vmem:[%s4] sm:$0xff]
        %v486 = vld [vmem:[%s4 + $0x8] sm:$0xff]
        %v487 = vadd.f32 %v477, %v485
        %v488 = vadd.f32 %v482, %v486
        %v489 = vxor.u32 %v487, 2147483648
        %v490 = vxor.u32 %v488, 2147483648
        %v491 = vmul.f32 %v489, 1.442695
        %v492 = vpow.pop %v491
        %v493 = vmul.f32 %v490, 1.442695
        %v494 = vpow.pop %v493
        %v495 = vadd.f32 %v492, 1.0
        %v496 = vadd.f32 %v494, 1.0
        %v497 = vrcp.pop %v495
        %v498 = vmul.f32 1.0, %v497
        %v499 = vrcp.pop %v496
        %v500 = vmul.f32 1.0, %v499
        %502 = vset.pattern.permute.xlu0 0
        %503 = vperm.xlu0 %502, %v498
        %v504 = vpop.permute.xlu0 %503
        %507 = vset.pattern.permute.xlu0 0
        %508 = vperm.xlu0 %507, %v500
        %v509 = vpop.permute.xlu0 %508
        %v511 = vmul.f32 %v384, %v504
        %v512 = vmul.f32 %v386, %v504
        %v513 = vmul.f32 %v388, %v509
        %v514 = vmul.f32 %v390, %v509
        %v515 = vadd.f32 %v511, %v513
        %v516 = vrot.slane %v515, 4
        %v517 = vadd.f32 %v515, %v516
        %v518 = vrot.slane %v517, 2
        %v519 = vadd.f32 %v517, %v518
        %v520 = vrot.slane %v519, 1
        %v521 = vadd.f32 %v519, %v520
        %v522 = vadd.f32 %v512, %v514
        %v523 = vrot.slane %v522, 4
        %v524 = vadd.f32 %v522, %v523
        %v525 = vrot.slane %v524, 2
        %v526 = vadd.f32 %v524, %v525
        %v527 = vrot.slane %v526, 1
        %v528 = vadd.f32 %v526, %v527
        %v529 = vrcp.pop 16.0
        %v530 = vmul.f32 %v521, %v529
        %v531 = vmul.f32 %v528, %v529
        %v532 = vmax.f32 %v511, %v513
        %v533 = vrot.slane %v532, 4
        %v534 = vmax.f32 %v532, %v533
        %v535 = vrot.slane %v534, 2
        %v536 = vmax.f32 %v534, %v535
        %v537 = vrot.slane %v536, 1
        %v538 = vmax.f32 %v536, %v537
        %v539 = vmax.f32 %v512, %v514
        %v540 = vrot.slane %v539, 4
        %v541 = vmax.f32 %v539, %v540
        %v542 = vrot.slane %v541, 2
        %v543 = vmax.f32 %v541, %v542
        %v544 = vrot.slane %v543, 1
        %v545 = vmax.f32 %v543, %v544
        %s546 = sld [smem:[#allocation2]]
        %s547 = sld [smem:[#allocation2 + $0x1]]
        %s548 = sld [smem:[#allocation2 + $0x2]]
        %s549 = sld [smem:[#allocation2 + $0x3]]
        %s550 = sld [smem:[#allocation2 + $0x4]]
        %s551 = sld [smem:[#allocation2 + $0x5]]
        %s552 = sld [smem:[#allocation2 + $0x6]]
        %s553 = sld [smem:[#allocation2 + $0x7]]
        %s554 = sld [smem:[#allocation2 + $0x8]]
        %s555 = sld [smem:[#allocation2 + $0x9]]
        %s556 = sld [smem:[#allocation2 + $0xa]]
        %s557 = sld [smem:[#allocation2 + $0xb]]
        %s558 = sld [smem:[#allocation2 + $0xc]]
        %s559 = sld [smem:[#allocation2 + $0xd]]
        %s560 = sld [smem:[#allocation2 + $0xe]]
        %s561 = sld [smem:[#allocation2 + $0xf]]
        %s562 = sld [smem:[#allocation2 + $0x10]]
        %s563 = sld [smem:[#allocation2 + $0x11]]
        %s564 = sld [smem:[#allocation2 + $0x12]]
        %s565 = sld [smem:[#allocation2 + $0x13]]
        %s566 = sld [smem:[#allocation2 + $0x14]]
        %s567 = sld [smem:[#allocation2 + $0x15]]
        %s568 = sld [smem:[#allocation2 + $0x16]]
        %s569 = sld [smem:[#allocation2 + $0x17]]
        %s570 = sld [smem:[#allocation2 + $0x18]]
        %s571 = sld [smem:[#allocation2 + $0x19]]
        %s572 = sld [smem:[#allocation2 + $0x1a]]
        %s573 = sld [smem:[#allocation2 + $0x1b]]
        %s574 = sld [smem:[#allocation2 + $0x1c]]
        %s575 = sld [smem:[#allocation2 + $0x1d]]
        %s576 = sld [smem:[#allocation2 + $0x1e]]
        %s577 = sld [smem:[#allocation2 + $0x1f]]
        %s578 = sld [smem:[#allocation2 + $0x20]]
        %s579 = sld [smem:[#allocation2 + $0x21]]
        %s580 = sld [smem:[#allocation2 + $0x22]]
        %s581 = sld [smem:[#allocation2 + $0x23]]
        %s582 = sld [smem:[#allocation2 + $0x24]]
        %s583 = sld [smem:[#allocation2 + $0x25]]
        %s584 = sld [smem:[#allocation2 + $0x26]]
        %s585 = sld [smem:[#allocation2 + $0x27]]
        %s586 = sld [smem:[#allocation2 + $0x28]]
        %s587 = sld [smem:[#allocation2 + $0x29]]
        %s588 = sld [smem:[#allocation2 + $0x2a]]
        %s589 = sld [smem:[#allocation2 + $0x2b]]
        %s590 = sld [smem:[#allocation2 + $0x2c]]
        %s591 = sld [smem:[#allocation2 + $0x2d]]
        %s592 = sld [smem:[#allocation2 + $0x2e]]
        %s593 = sld [smem:[#allocation2 + $0x2f]]
        %s594 = sld [smem:[#allocation2 + $0x30]]
        %s595 = sld [smem:[#allocation2 + $0x31]]
        %s596 = sld [smem:[#allocation2 + $0x32]]
        %s597 = sld [smem:[#allocation2 + $0x33]]
        %s598 = sld [smem:[#allocation2 + $0x34]]
        %s599 = sld [smem:[#allocation2 + $0x35]]
        %s600 = sld [smem:[#allocation2 + $0x36]]
        %s601 = sld [smem:[#allocation2 + $0x37]]
        %s602 = sld [smem:[#allocation2 + $0x38]]
        %s603 = sld [smem:[#allocation2 + $0x39]]
        %s604 = sld [smem:[#allocation2 + $0x3a]]
        %s605 = sld [smem:[#allocation2 + $0x3b]]
        %s606 = sld [smem:[#allocation2 + $0x3c]]
        %s607 = sld [smem:[#allocation2 + $0x3d]]
        %s608 = sld [smem:[#allocation2 + $0x3e]]
        %s609 = sld [smem:[#allocation2 + $0x3f]]
        %s610 = sld [smem:[#allocation2 + $0x40]]
        %s611 = sld [smem:[#allocation2 + $0x41]]
        %s612 = sld [smem:[#allocation2 + $0x42]]
        %s613 = sld [smem:[#allocation2 + $0x43]]
        %s614 = sld [smem:[#allocation2 + $0x44]]
        %s615 = sld [smem:[#allocation2 + $0x45]]
        %s616 = sld [smem:[#allocation2 + $0x46]]
        %s617 = sld [smem:[#allocation2 + $0x47]]
        %s618 = sld [smem:[#allocation2 + $0x48]]
        %s619 = sld [smem:[#allocation2 + $0x49]]
        %s620 = sld [smem:[#allocation2 + $0x4a]]
        %s621 = sld [smem:[#allocation2 + $0x4b]]
        %s622 = sld [smem:[#allocation2 + $0x4c]]
        %s623 = sld [smem:[#allocation2 + $0x4d]]
        %s624 = sld [smem:[#allocation2 + $0x4e]]
        %s625 = sld [smem:[#allocation2 + $0x4f]]
        %s626 = sld [smem:[#allocation2 + $0x50]]
        %s627 = sld [smem:[#allocation2 + $0x51]]
        %s628 = sld [smem:[#allocation2 + $0x52]]
        %s629 = sld [smem:[#allocation2 + $0x53]]
        %s630 = sld [smem:[#allocation2 + $0x54]]
        %s631 = sld [smem:[#allocation2 + $0x55]]
        %s632 = sld [smem:[#allocation2 + $0x56]]
        %s633 = sld [smem:[#allocation2 + $0x57]]
        %s634 = sld [smem:[#allocation2 + $0x58]]
        %s635 = sld [smem:[#allocation2 + $0x59]]
        %s636 = sld [smem:[#allocation2 + $0x5a]]
        %s637 = sld [smem:[#allocation2 + $0x5b]]
        %s638 = sld [smem:[#allocation2 + $0x5c]]
        %s639 = sld [smem:[#allocation2 + $0x5d]]
        %s640 = sld [smem:[#allocation2 + $0x5e]]
        %s641 = sld [smem:[#allocation2 + $0x5f]]
        %s642 = sld [smem:[#allocation2 + $0x60]]
        %s643 = sld [smem:[#allocation2 + $0x61]]
        %v644 = vld [vmem:[%s5] ss:$8 sm:$0x3]
        %645 = vrot.lane.b32.xlu0 %v530, 3
        %v646 = vpop.permute.xlu0 %645
        %647 = vrot.lane.b32.xlu0 %v531, 3
        %v648 = vpop.permute.xlu0 %647
        %v649 = vlaneseq
        %v650 = vand.u32 %v649, 127
        %vm651 = vcmp.lt.s32.totalorder %v650, 3
        %v652 = vsel %vm651, %v646, %v648
        %v653 = vsel %vm651, %v648, %v646
        %v655 = vlaneseq
        %v656 = vshrl.u32 %v655, 7
        %v657 = vsub.s32 0, %v656
        %v658 = vrot.slane %v644, %v657
        %v659 = vlaneseq
        %v660 = vshrl.u32 %v659, 7
        %v661 = vsub.s32 1, %v660
        %v662 = vrot.slane %v644, %v661
        %v665 = vmul.f32 %v653, %v658
        %v666 = vmul.f32 %v652, %v662
        %667 = vrot.lane.b32.xlu0 %v538, 3
        %v668 = vpop.permute.xlu0 %667
        %669 = vrot.lane.b32.xlu0 %v545, 3
        %v670 = vpop.permute.xlu0 %669
        %v671 = vsel %vm651, %v668, %v670
        %v672 = vsel %vm651, %v670, %v668
        %v673 = vmul.f32 %v672, %v658
        %v674 = vmul.f32 %v671, %v662
        %s675 = scalar_lea.vmem %s5, 1
        %v676 = vld [vmem:[%s675] ss:$8 sm:$0x3]
        %677 = vrot.lane.b32.xlu0 %v530, 2
        %v678 = vpop.permute.xlu0 %677
        %679 = vrot.lane.b32.xlu0 %v531, 2
        %v680 = vpop.permute.xlu0 %679
        %vm681 = vcmp.lt.s32.totalorder %v650, 2
        %v682 = vsel %vm681, %v678, %v680
        %v683 = vsel %vm681, %v680, %v678
        %v685 = vlaneseq
        %v686 = vshrl.u32 %v685, 7
        %v687 = vsub.s32 0, %v686
        %v688 = vrot.slane %v676, %v687
        %v689 = vlaneseq
        %v690 = vshrl.u32 %v689, 7
        %v691 = vsub.s32 1, %v690
        %v692 = vrot.slane %v676, %v691
        %v695 = vmul.f32 %v683, %v688
        %v696 = vmul.f32 %v682, %v692
        %697 = vrot.lane.b32.xlu0 %v538, 2
        %v698 = vpop.permute.xlu0 %697
        %699 = vrot.lane.b32.xlu0 %v545, 2
        %v700 = vpop.permute.xlu0 %699
        %v701 = vsel %vm681, %v698, %v700
        %v702 = vsel %vm681, %v700, %v698
        %v703 = vmul.f32 %v702, %v688
        %v704 = vmul.f32 %v701, %v692
        %s705 = scalar_lea.vmem %s5, 2
        %v706 = vld [vmem:[%s705] ss:$8 sm:$0x3]
        %707 = vrot.lane.b32.xlu0 %v530, 1
        %v708 = vpop.permute.xlu0 %707
        %709 = vrot.lane.b32.xlu0 %v531, 1
        %v710 = vpop.permute.xlu0 %709
        %vm711 = vcmp.lt.s32.totalorder %v650, 1
        %v712 = vsel %vm711, %v708, %v710
        %v713 = vsel %vm711, %v710, %v708
        %v715 = vlaneseq
        %v716 = vshrl.u32 %v715, 7
        %v717 = vsub.s32 0, %v716
        %v718 = vrot.slane %v706, %v717
        %v719 = vlaneseq
        %v720 = vshrl.u32 %v719, 7
        %v721 = vsub.s32 1, %v720
        %v722 = vrot.slane %v706, %v721
        %v725 = vmul.f32 %v713, %v718
        %v726 = vmul.f32 %v712, %v722
        %727 = vrot.lane.b32.xlu0 %v538, 1
        %v728 = vpop.permute.xlu0 %727
        %729 = vrot.lane.b32.xlu0 %v545, 1
        %v730 = vpop.permute.xlu0 %729
        %v731 = vsel %vm711, %v728, %v730
        %v732 = vsel %vm711, %v730, %v728
        %v733 = vmul.f32 %v732, %v718
        %v734 = vmul.f32 %v731, %v722
        %s735 = scalar_lea.vmem %s5, 3
        %v736 = vld [vmem:[%s735] ss:$8 sm:$0x3]
        %v738 = vlaneseq
        %v739 = vshrl.u32 %v738, 7
        %v740 = vsub.s32 0, %v739
        %v741 = vrot.slane %v736, %v740
        %v742 = vlaneseq
        %v743 = vshrl.u32 %v742, 7
        %v744 = vsub.s32 1, %v743
        %v745 = vrot.slane %v736, %v744
        %v748 = vmul.f32 %v530, %v741
        %v749 = vmul.f32 %v531, %v745
        %v750 = vmul.f32 %v538, %v741
        %v751 = vmul.f32 %v545, %v745
        %s752 = scalar_lea.vmem %s5, 4
        %v753 = vld [vmem:[%s752] ss:$8 sm:$0x3]
        %754 = vrot.lane.b32.xlu0 %v530, 127
        %v755 = vpop.permute.xlu0 %754
        %756 = vrot.lane.b32.xlu0 %v531, 127
        %v757 = vpop.permute.xlu0 %756
        %vm758 = vcmp.lt.s32.totalorder %v650, 127
        %v759 = vsel %vm758, %v755, %v757
        %v760 = vsel %vm758, %v757, %v755
        %v762 = vlaneseq
        %v763 = vshrl.u32 %v762, 7
        %v764 = vsub.s32 0, %v763
        %v765 = vrot.slane %v753, %v764
        %v766 = vlaneseq
        %v767 = vshrl.u32 %v766, 7
        %v768 = vsub.s32 1, %v767
        %v769 = vrot.slane %v753, %v768
        %v772 = vmul.f32 %v759, %v765
        %v773 = vmul.f32 %v760, %v769
        %774 = vrot.lane.b32.xlu0 %v538, 127
        %v775 = vpop.permute.xlu0 %774
        %776 = vrot.lane.b32.xlu0 %v545, 127
        %v777 = vpop.permute.xlu0 %776
        %v778 = vsel %vm758, %v775, %v777
        %v779 = vsel %vm758, %v777, %v775
        %v780 = vmul.f32 %v778, %v765
        %v781 = vmul.f32 %v779, %v769
        %s782 = scalar_lea.vmem %s5, 5
        %v783 = vld [vmem:[%s782] ss:$8 sm:$0x3]
        %784 = vrot.lane.b32.xlu0 %v530, 126
        %v785 = vpop.permute.xlu0 %784
        %786 = vrot.lane.b32.xlu0 %v531, 126
        %v787 = vpop.permute.xlu0 %786
        %vm788 = vcmp.lt.s32.totalorder %v650, 126
        %v789 = vsel %vm788, %v785, %v787
        %v790 = vsel %vm788, %v787, %v785
        %v792 = vlaneseq
        %v793 = vshrl.u32 %v792, 7
        %v794 = vsub.s32 0, %v793
        %v795 = vrot.slane %v783, %v794
        %v796 = vlaneseq
        %v797 = vshrl.u32 %v796, 7
        %v798 = vsub.s32 1, %v797
        %v799 = vrot.slane %v783, %v798
        %v802 = vmul.f32 %v789, %v795
        %v803 = vmul.f32 %v790, %v799
        %804 = vrot.lane.b32.xlu0 %v538, 126
        %v805 = vpop.permute.xlu0 %804
        %806 = vrot.lane.b32.xlu0 %v545, 126
        %v807 = vpop.permute.xlu0 %806
        %v808 = vsel %vm788, %v805, %v807
        %v809 = vsel %vm788, %v807, %v805
        %v810 = vmul.f32 %v808, %v795
        %v811 = vmul.f32 %v809, %v799
        %s812 = scalar_lea.vmem %s5, 6
        %v813 = vld [vmem:[%s812] ss:$8 sm:$0x3]
        %814 = vrot.lane.b32.xlu0 %v530, 125
        %v815 = vpop.permute.xlu0 %814
        %816 = vrot.lane.b32.xlu0 %v531, 125
        %v817 = vpop.permute.xlu0 %816
        %vm818 = vcmp.lt.s32.totalorder %v650, 125
        %v819 = vsel %vm818, %v815, %v817
        %v820 = vsel %vm818, %v817, %v815
        %v822 = vlaneseq
        %v823 = vshrl.u32 %v822, 7
        %v824 = vsub.s32 0, %v823
        %v825 = vrot.slane %v813, %v824
        %v826 = vlaneseq
        %v827 = vshrl.u32 %v826, 7
        %v828 = vsub.s32 1, %v827
        %v829 = vrot.slane %v813, %v828
        %v832 = vmul.f32 %v819, %v825
        %v833 = vmul.f32 %v820, %v829
        %834 = vrot.lane.b32.xlu0 %v538, 125
        %v835 = vpop.permute.xlu0 %834
        %836 = vrot.lane.b32.xlu0 %v545, 125
        %v837 = vpop.permute.xlu0 %836
        %v838 = vsel %vm818, %v835, %v837
        %v839 = vsel %vm818, %v837, %v835
        %v840 = vmul.f32 %v838, %v825
        %v841 = vmul.f32 %v839, %v829
        %v842 = vstv %s546
        %v843 = vmul.f32 %v842, %v665
        %v844 = vmul.f32 %v842, %v666
        %v845 = vadd.f32 %v843, 0.0
        %v846 = vadd.f32 %v844, 0.0
        %v847 = vstv %s595
        %v848 = vmul.f32 %v847, %v673
        %v849 = vmul.f32 %v847, %v674
        %v850 = vadd.f32 %v845, %v848
        %v851 = vadd.f32 %v846, %v849
        %v852 = vstv %s547
        %v853 = vmul.f32 %v852, %v695
        %v854 = vmul.f32 %v852, %v696
        %v855 = vadd.f32 %v850, %v853
        %v856 = vadd.f32 %v851, %v854
        %v857 = vstv %s596
        %v858 = vmul.f32 %v857, %v703
        %v859 = vmul.f32 %v857, %v704
        %v860 = vadd.f32 %v855, %v858
        %v861 = vadd.f32 %v856, %v859
        %v862 = vstv %s548
        %v863 = vmul.f32 %v862, %v725
        %v864 = vmul.f32 %v862, %v726
        %v865 = vadd.f32 %v860, %v863
        %v866 = vadd.f32 %v861, %v864
        %v867 = vstv %s597
        %v868 = vmul.f32 %v867, %v733
        %v869 = vmul.f32 %v867, %v734
        %v870 = vadd.f32 %v865, %v868
        %v871 = vadd.f32 %v866, %v869
        %v872 = vstv %s549
        %v873 = vmul.f32 %v872, %v748
        %v874 = vmul.f32 %v872, %v749
        %v875 = vadd.f32 %v870, %v873
        %v876 = vadd.f32 %v871, %v874
        %v877 = vstv %s598
        %v878 = vmul.f32 %v877, %v750
        %v879 = vmul.f32 %v877, %v751
        %v880 = vadd.f32 %v875, %v878
        %v881 = vadd.f32 %v876, %v879
        %v882 = vstv %s550
        %v883 = vmul.f32 %v882, %v772
        %v884 = vmul.f32 %v882, %v773
        %v885 = vadd.f32 %v880, %v883
        %v886 = vadd.f32 %v881, %v884
        %v887 = vstv %s599
        %v888 = vmul.f32 %v887, %v780
        %v889 = vmul.f32 %v887, %v781
        %v890 = vadd.f32 %v885, %v888
        %v891 = vadd.f32 %v886, %v889
        %v892 = vstv %s551
        %v893 = vmul.f32 %v892, %v802
        %v894 = vmul.f32 %v892, %v803
        %v895 = vadd.f32 %v890, %v893
        %v896 = vadd.f32 %v891, %v894
        %v897 = vstv %s600
        %v898 = vmul.f32 %v897, %v810
        %v899 = vmul.f32 %v897, %v811
        %v900 = vadd.f32 %v895, %v898
        %v901 = vadd.f32 %v896, %v899
        %v902 = vstv %s552
        %v903 = vmul.f32 %v902, %v832
        %v904 = vmul.f32 %v902, %v833
        %v905 = vadd.f32 %v900, %v903
        %v906 = vadd.f32 %v901, %v904
        %v907 = vstv %s601
        %v908 = vmul.f32 %v907, %v840
        %v909 = vmul.f32 %v907, %v841
        %v910 = vadd.f32 %v905, %v908
        %v911 = vadd.f32 %v906, %v909
        %v912 = vld [vmem:[%s6] ss:$8 sm:$0x3]
        %913 = vrot.lane.b32.xlu0 %v910, 48
        %v914 = vpop.permute.xlu0 %913
        %915 = vrot.lane.b32.xlu0 %v911, 48
        %v916 = vpop.permute.xlu0 %915
        %vm917 = vcmp.lt.s32.totalorder %v650, 48
        %v918 = vsel %vm917, %v914, %v916
        %v919 = vsel %vm917, %v916, %v914
        %v921 = vlaneseq
        %v922 = vshrl.u32 %v921, 7
        %v923 = vsub.s32 0, %v922
        %v924 = vrot.slane %v912, %v923
        %v925 = vlaneseq
        %v926 = vshrl.u32 %v925, 7
        %v927 = vsub.s32 1, %v926
        %v928 = vrot.slane %v912, %v927
        %v931 = vmul.f32 %v919, %v924
        %v932 = vmul.f32 %v918, %v928
        %v933 = vadd.f32 %v931, 0.0
        %v934 = vadd.f32 %v932, 0.0
        %v935 = vstv %s553
        %v936 = vmul.f32 %v935, %v665
        %v937 = vmul.f32 %v935, %v666
        %v938 = vadd.f32 %v936, 0.0
        %v939 = vadd.f32 %v937, 0.0
        %v940 = vstv %s602
        %v941 = vmul.f32 %v940, %v673
        %v942 = vmul.f32 %v940, %v674
        %v943 = vadd.f32 %v938, %v941
        %v944 = vadd.f32 %v939, %v942
        %v945 = vstv %s554
        %v946 = vmul.f32 %v945, %v695
        %v947 = vmul.f32 %v945, %v696
        %v948 = vadd.f32 %v943, %v946
        %v949 = vadd.f32 %v944, %v947
        %v950 = vstv %s603
        %v951 = vmul.f32 %v950, %v703
        %v952 = vmul.f32 %v950, %v704
        %v953 = vadd.f32 %v948, %v951
        %v954 = vadd.f32 %v949, %v952
        %v955 = vstv %s555
        %v956 = vmul.f32 %v955, %v725
        %v957 = vmul.f32 %v955, %v726
        %v958 = vadd.f32 %v953, %v956
        %v959 = vadd.f32 %v954, %v957
        %v960 = vstv %s604
        %v961 = vmul.f32 %v960, %v733
        %v962 = vmul.f32 %v960, %v734
        %v963 = vadd.f32 %v958, %v961
        %v964 = vadd.f32 %v959, %v962
        %v965 = vstv %s556
        %v966 = vmul.f32 %v965, %v748
        %v967 = vmul.f32 %v965, %v749
        %v968 = vadd.f32 %v963, %v966
        %v969 = vadd.f32 %v964, %v967
        %v970 = vstv %s605
        %v971 = vmul.f32 %v970, %v750
        %v972 = vmul.f32 %v970, %v751
        %v973 = vadd.f32 %v968, %v971
        %v974 = vadd.f32 %v969, %v972
        %v975 = vstv %s557
        %v976 = vmul.f32 %v975, %v772
        %v977 = vmul.f32 %v975, %v773
        %v978 = vadd.f32 %v973, %v976
        %v979 = vadd.f32 %v974, %v977
        %v980 = vstv %s606
        %v981 = vmul.f32 %v980, %v780
        %v982 = vmul.f32 %v980, %v781
        %v983 = vadd.f32 %v978, %v981
        %v984 = vadd.f32 %v979, %v982
        %v985 = vstv %s558
        %v986 = vmul.f32 %v985, %v802
        %v987 = vmul.f32 %v985, %v803
        %v988 = vadd.f32 %v983, %v986
        %v989 = vadd.f32 %v984, %v987
        %v990 = vstv %s607
        %v991 = vmul.f32 %v990, %v810
        %v992 = vmul.f32 %v990, %v811
        %v993 = vadd.f32 %v988, %v991
        %v994 = vadd.f32 %v989, %v992
        %v995 = vstv %s559
        %v996 = vmul.f32 %v995, %v832
        %v997 = vmul.f32 %v995, %v833
        %v998 = vadd.f32 %v993, %v996
        %v999 = vadd.f32 %v994, %v997
        %v1000 = vstv %s608
        %v1001 = vmul.f32 %v1000, %v840
        %v1002 = vmul.f32 %v1000, %v841
        %v1003 = vadd.f32 %v998, %v1001
        %v1004 = vadd.f32 %v999, %v1002
        %s1005 = scalar_lea.vmem %s6, 1
        %v1006 = vld [vmem:[%s1005] ss:$8 sm:$0x3]
        %1007 = vrot.lane.b32.xlu0 %v1003, 32
        %v1008 = vpop.permute.xlu0 %1007
        %1009 = vrot.lane.b32.xlu0 %v1004, 32
        %v1010 = vpop.permute.xlu0 %1009
        %vm1011 = vcmp.lt.s32.totalorder %v650, 32
        %v1012 = vsel %vm1011, %v1008, %v1010
        %v1013 = vsel %vm1011, %v1010, %v1008
        %v1015 = vlaneseq
        %v1016 = vshrl.u32 %v1015, 7
        %v1017 = vsub.s32 0, %v1016
        %v1018 = vrot.slane %v1006, %v1017
        %v1019 = vlaneseq
        %v1020 = vshrl.u32 %v1019, 7
        %v1021 = vsub.s32 1, %v1020
        %v1022 = vrot.slane %v1006, %v1021
        %v1025 = vmul.f32 %v1013, %v1018
        %v1026 = vmul.f32 %v1012, %v1022
        %v1027 = vadd.f32 %v933, %v1025
        %v1028 = vadd.f32 %v934, %v1026
        %v1029 = vstv %s560
        %v1030 = vmul.f32 %v1029, %v665
        %v1031 = vmul.f32 %v1029, %v666
        %v1032 = vadd.f32 %v1030, 0.0
        %v1033 = vadd.f32 %v1031, 0.0
        %v1034 = vstv %s609
        %v1035 = vmul.f32 %v1034, %v673
        %v1036 = vmul.f32 %v1034, %v674
        %v1037 = vadd.f32 %v1032, %v1035
        %v1038 = vadd.f32 %v1033, %v1036
        %v1039 = vstv %s561
        %v1040 = vmul.f32 %v1039, %v695
        %v1041 = vmul.f32 %v1039, %v696
        %v1042 = vadd.f32 %v1037, %v1040
        %v1043 = vadd.f32 %v1038, %v1041
        %v1044 = vstv %s610
        %v1045 = vmul.f32 %v1044, %v703
        %v1046 = vmul.f32 %v1044, %v704
        %v1047 = vadd.f32 %v1042, %v1045
        %v1048 = vadd.f32 %v1043, %v1046
        %v1049 = vstv %s562
        %v1050 = vmul.f32 %v1049, %v725
        %v1051 = vmul.f32 %v1049, %v726
        %v1052 = vadd.f32 %v1047, %v1050
        %v1053 = vadd.f32 %v1048, %v1051
        %v1054 = vstv %s611
        %v1055 = vmul.f32 %v1054, %v733
        %v1056 = vmul.f32 %v1054, %v734
        %v1057 = vadd.f32 %v1052, %v1055
        %v1058 = vadd.f32 %v1053, %v1056
        %v1059 = vstv %s563
        %v1060 = vmul.f32 %v1059, %v748
        %v1061 = vmul.f32 %v1059, %v749
        %v1062 = vadd.f32 %v1057, %v1060
        %v1063 = vadd.f32 %v1058, %v1061
        %v1064 = vstv %s612
        %v1065 = vmul.f32 %v1064, %v750
        %v1066 = vmul.f32 %v1064, %v751
        %v1067 = vadd.f32 %v1062, %v1065
        %v1068 = vadd.f32 %v1063, %v1066
        %v1069 = vstv %s564
        %v1070 = vmul.f32 %v1069, %v772
        %v1071 = vmul.f32 %v1069, %v773
        %v1072 = vadd.f32 %v1067, %v1070
        %v1073 = vadd.f32 %v1068, %v1071
        %v1074 = vstv %s613
        %v1075 = vmul.f32 %v1074, %v780
        %v1076 = vmul.f32 %v1074, %v781
        %v1077 = vadd.f32 %v1072, %v1075
        %v1078 = vadd.f32 %v1073, %v1076
        %v1079 = vstv %s565
        %v1080 = vmul.f32 %v1079, %v802
        %v1081 = vmul.f32 %v1079, %v803
        %v1082 = vadd.f32 %v1077, %v1080
        %v1083 = vadd.f32 %v1078, %v1081
        %v1084 = vstv %s614
        %v1085 = vmul.f32 %v1084, %v810
        %v1086 = vmul.f32 %v1084, %v811
        %v1087 = vadd.f32 %v1082, %v1085
        %v1088 = vadd.f32 %v1083, %v1086
        %v1089 = vstv %s566
        %v1090 = vmul.f32 %v1089, %v832
        %v1091 = vmul.f32 %v1089, %v833
        %v1092 = vadd.f32 %v1087, %v1090
        %v1093 = vadd.f32 %v1088, %v1091
        %v1094 = vstv %s615
        %v1095 = vmul.f32 %v1094, %v840
        %v1096 = vmul.f32 %v1094, %v841
        %v1097 = vadd.f32 %v1092, %v1095
        %v1098 = vadd.f32 %v1093, %v1096
        %s1099 = scalar_lea.vmem %s6, 2
        %v1100 = vld [vmem:[%s1099] ss:$8 sm:$0x3]
        %1101 = vrot.lane.b32.xlu0 %v1097, 16
        %v1102 = vpop.permute.xlu0 %1101
        %1103 = vrot.lane.b32.xlu0 %v1098, 16
        %v1104 = vpop.permute.xlu0 %1103
        %vm1105 = vcmp.lt.s32.totalorder %v650, 16
        %v1106 = vsel %vm1105, %v1102, %v1104
        %v1107 = vsel %vm1105, %v1104, %v1102
        %v1109 = vlaneseq
        %v1110 = vshrl.u32 %v1109, 7
        %v1111 = vsub.s32 0, %v1110
        %v1112 = vrot.slane %v1100, %v1111
        %v1113 = vlaneseq
        %v1114 = vshrl.u32 %v1113, 7
        %v1115 = vsub.s32 1, %v1114
        %v1116 = vrot.slane %v1100, %v1115
        %v1119 = vmul.f32 %v1107, %v1112
        %v1120 = vmul.f32 %v1106, %v1116
        %v1121 = vadd.f32 %v1027, %v1119
        %v1122 = vadd.f32 %v1028, %v1120
        %v1123 = vstv %s567
        %v1124 = vmul.f32 %v1123, %v665
        %v1125 = vmul.f32 %v1123, %v666
        %v1126 = vadd.f32 %v1124, 0.0
        %v1127 = vadd.f32 %v1125, 0.0
        %v1128 = vstv %s616
        %v1129 = vmul.f32 %v1128, %v673
        %v1130 = vmul.f32 %v1128, %v674
        %v1131 = vadd.f32 %v1126, %v1129
        %v1132 = vadd.f32 %v1127, %v1130
        %v1133 = vstv %s568
        %v1134 = vmul.f32 %v1133, %v695
        %v1135 = vmul.f32 %v1133, %v696
        %v1136 = vadd.f32 %v1131, %v1134
        %v1137 = vadd.f32 %v1132, %v1135
        %v1138 = vstv %s617
        %v1139 = vmul.f32 %v1138, %v703
        %v1140 = vmul.f32 %v1138, %v704
        %v1141 = vadd.f32 %v1136, %v1139
        %v1142 = vadd.f32 %v1137, %v1140
        %v1143 = vstv %s569
        %v1144 = vmul.f32 %v1143, %v725
        %v1145 = vmul.f32 %v1143, %v726
        %v1146 = vadd.f32 %v1141, %v1144
        %v1147 = vadd.f32 %v1142, %v1145
        %v1148 = vstv %s618
        %v1149 = vmul.f32 %v1148, %v733
        %v1150 = vmul.f32 %v1148, %v734
        %v1151 = vadd.f32 %v1146, %v1149
        %v1152 = vadd.f32 %v1147, %v1150
        %v1153 = vstv %s570
        %v1154 = vmul.f32 %v1153, %v748
        %v1155 = vmul.f32 %v1153, %v749
        %v1156 = vadd.f32 %v1151, %v1154
        %v1157 = vadd.f32 %v1152, %v1155
        %v1158 = vstv %s619
        %v1159 = vmul.f32 %v1158, %v750
        %v1160 = vmul.f32 %v1158, %v751
        %v1161 = vadd.f32 %v1156, %v1159
        %v1162 = vadd.f32 %v1157, %v1160
        %v1163 = vstv %s571
        %v1164 = vmul.f32 %v1163, %v772
        %v1165 = vmul.f32 %v1163, %v773
        %v1166 = vadd.f32 %v1161, %v1164
        %v1167 = vadd.f32 %v1162, %v1165
        %v1168 = vstv %s620
        %v1169 = vmul.f32 %v1168, %v780
        %v1170 = vmul.f32 %v1168, %v781
        %v1171 = vadd.f32 %v1166, %v1169
        %v1172 = vadd.f32 %v1167, %v1170
        %v1173 = vstv %s572
        %v1174 = vmul.f32 %v1173, %v802
        %v1175 = vmul.f32 %v1173, %v803
        %v1176 = vadd.f32 %v1171, %v1174
        %v1177 = vadd.f32 %v1172, %v1175
        %v1178 = vstv %s621
        %v1179 = vmul.f32 %v1178, %v810
        %v1180 = vmul.f32 %v1178, %v811
        %v1181 = vadd.f32 %v1176, %v1179
        %v1182 = vadd.f32 %v1177, %v1180
        %v1183 = vstv %s573
        %v1184 = vmul.f32 %v1183, %v832
        %v1185 = vmul.f32 %v1183, %v833
        %v1186 = vadd.f32 %v1181, %v1184
        %v1187 = vadd.f32 %v1182, %v1185
        %v1188 = vstv %s622
        %v1189 = vmul.f32 %v1188, %v840
        %v1190 = vmul.f32 %v1188, %v841
        %v1191 = vadd.f32 %v1186, %v1189
        %v1192 = vadd.f32 %v1187, %v1190
        %s1193 = scalar_lea.vmem %s6, 3
        %v1194 = vld [vmem:[%s1193] ss:$8 sm:$0x3]
        %v1196 = vlaneseq
        %v1197 = vshrl.u32 %v1196, 7
        %v1198 = vsub.s32 0, %v1197
        %v1199 = vrot.slane %v1194, %v1198
        %v1200 = vlaneseq
        %v1201 = vshrl.u32 %v1200, 7
        %v1202 = vsub.s32 1, %v1201
        %v1203 = vrot.slane %v1194, %v1202
        %v1206 = vmul.f32 %v1191, %v1199
        %v1207 = vmul.f32 %v1192, %v1203
        %v1208 = vadd.f32 %v1121, %v1206
        %v1209 = vadd.f32 %v1122, %v1207
        %v1210 = vstv %s574
        %v1211 = vmul.f32 %v1210, %v665
        %v1212 = vmul.f32 %v1210, %v666
        %v1213 = vadd.f32 %v1211, 0.0
        %v1214 = vadd.f32 %v1212, 0.0
        %v1215 = vstv %s623
        %v1216 = vmul.f32 %v1215, %v673
        %v1217 = vmul.f32 %v1215, %v674
        %v1218 = vadd.f32 %v1213, %v1216
        %v1219 = vadd.f32 %v1214, %v1217
        %v1220 = vstv %s575
        %v1221 = vmul.f32 %v1220, %v695
        %v1222 = vmul.f32 %v1220, %v696
        %v1223 = vadd.f32 %v1218, %v1221
        %v1224 = vadd.f32 %v1219, %v1222
        %v1225 = vstv %s624
        %v1226 = vmul.f32 %v1225, %v703
        %v1227 = vmul.f32 %v1225, %v704
        %v1228 = vadd.f32 %v1223, %v1226
        %v1229 = vadd.f32 %v1224, %v1227
        %v1230 = vstv %s576
        %v1231 = vmul.f32 %v1230, %v725
        %v1232 = vmul.f32 %v1230, %v726
        %v1233 = vadd.f32 %v1228, %v1231
        %v1234 = vadd.f32 %v1229, %v1232
        %v1235 = vstv %s625
        %v1236 = vmul.f32 %v1235, %v733
        %v1237 = vmul.f32 %v1235, %v734
        %v1238 = vadd.f32 %v1233, %v1236
        %v1239 = vadd.f32 %v1234, %v1237
        %v1240 = vstv %s577
        %v1241 = vmul.f32 %v1240, %v748
        %v1242 = vmul.f32 %v1240, %v749
        %v1243 = vadd.f32 %v1238, %v1241
        %v1244 = vadd.f32 %v1239, %v1242
        %v1245 = vstv %s626
        %v1246 = vmul.f32 %v1245, %v750
        %v1247 = vmul.f32 %v1245, %v751
        %v1248 = vadd.f32 %v1243, %v1246
        %v1249 = vadd.f32 %v1244, %v1247
        %v1250 = vstv %s578
        %v1251 = vmul.f32 %v1250, %v772
        %v1252 = vmul.f32 %v1250, %v773
        %v1253 = vadd.f32 %v1248, %v1251
        %v1254 = vadd.f32 %v1249, %v1252
        %v1255 = vstv %s627
        %v1256 = vmul.f32 %v1255, %v780
        %v1257 = vmul.f32 %v1255, %v781
        %v1258 = vadd.f32 %v1253, %v1256
        %v1259 = vadd.f32 %v1254, %v1257
        %v1260 = vstv %s579
        %v1261 = vmul.f32 %v1260, %v802
        %v1262 = vmul.f32 %v1260, %v803
        %v1263 = vadd.f32 %v1258, %v1261
        %v1264 = vadd.f32 %v1259, %v1262
        %v1265 = vstv %s628
        %v1266 = vmul.f32 %v1265, %v810
        %v1267 = vmul.f32 %v1265, %v811
        %v1268 = vadd.f32 %v1263, %v1266
        %v1269 = vadd.f32 %v1264, %v1267
        %v1270 = vstv %s580
        %v1271 = vmul.f32 %v1270, %v832
        %v1272 = vmul.f32 %v1270, %v833
        %v1273 = vadd.f32 %v1268, %v1271
        %v1274 = vadd.f32 %v1269, %v1272
        %v1275 = vstv %s629
        %v1276 = vmul.f32 %v1275, %v840
        %v1277 = vmul.f32 %v1275, %v841
        %v1278 = vadd.f32 %v1273, %v1276
        %v1279 = vadd.f32 %v1274, %v1277
        %s1280 = scalar_lea.vmem %s6, 4
        %v1281 = vld [vmem:[%s1280] ss:$8 sm:$0x3]
        %1282 = vrot.lane.b32.xlu0 %v1278, 112
        %v1283 = vpop.permute.xlu0 %1282
        %1284 = vrot.lane.b32.xlu0 %v1279, 112
        %v1285 = vpop.permute.xlu0 %1284
        %vm1286 = vcmp.lt.s32.totalorder %v650, 112
        %v1287 = vsel %vm1286, %v1283, %v1285
        %v1288 = vsel %vm1286, %v1285, %v1283
        %v1290 = vlaneseq
        %v1291 = vshrl.u32 %v1290, 7
        %v1292 = vsub.s32 0, %v1291
        %v1293 = vrot.slane %v1281, %v1292
        %v1294 = vlaneseq
        %v1295 = vshrl.u32 %v1294, 7
        %v1296 = vsub.s32 1, %v1295
        %v1297 = vrot.slane %v1281, %v1296
        %v1300 = vmul.f32 %v1287, %v1293
        %v1301 = vmul.f32 %v1288, %v1297
        %v1302 = vadd.f32 %v1208, %v1300
        %v1303 = vadd.f32 %v1209, %v1301
        %v1304 = vstv %s581
        %v1305 = vmul.f32 %v1304, %v665
        %v1306 = vmul.f32 %v1304, %v666
        %v1307 = vadd.f32 %v1305, 0.0
        %v1308 = vadd.f32 %v1306, 0.0
        %v1309 = vstv %s630
        %v1310 = vmul.f32 %v1309, %v673
        %v1311 = vmul.f32 %v1309, %v674
        %v1312 = vadd.f32 %v1307, %v1310
        %v1313 = vadd.f32 %v1308, %v1311
        %v1314 = vstv %s582
        %v1315 = vmul.f32 %v1314, %v695
        %v1316 = vmul.f32 %v1314, %v696
        %v1317 = vadd.f32 %v1312, %v1315
        %v1318 = vadd.f32 %v1313, %v1316
        %v1319 = vstv %s631
        %v1320 = vmul.f32 %v1319, %v703
        %v1321 = vmul.f32 %v1319, %v704
        %v1322 = vadd.f32 %v1317, %v1320
        %v1323 = vadd.f32 %v1318, %v1321
        %v1324 = vstv %s583
        %v1325 = vmul.f32 %v1324, %v725
        %v1326 = vmul.f32 %v1324, %v726
        %v1327 = vadd.f32 %v1322, %v1325
        %v1328 = vadd.f32 %v1323, %v1326
        %v1329 = vstv %s632
        %v1330 = vmul.f32 %v1329, %v733
        %v1331 = vmul.f32 %v1329, %v734
        %v1332 = vadd.f32 %v1327, %v1330
        %v1333 = vadd.f32 %v1328, %v1331
        %v1334 = vstv %s584
        %v1335 = vmul.f32 %v1334, %v748
        %v1336 = vmul.f32 %v1334, %v749
        %v1337 = vadd.f32 %v1332, %v1335
        %v1338 = vadd.f32 %v1333, %v1336
        %v1339 = vstv %s633
        %v1340 = vmul.f32 %v1339, %v750
        %v1341 = vmul.f32 %v1339, %v751
        %v1342 = vadd.f32 %v1337, %v1340
        %v1343 = vadd.f32 %v1338, %v1341
        %v1344 = vstv %s585
        %v1345 = vmul.f32 %v1344, %v772
        %v1346 = vmul.f32 %v1344, %v773
        %v1347 = vadd.f32 %v1342, %v1345
        %v1348 = vadd.f32 %v1343, %v1346
        %v1349 = vstv %s634
        %v1350 = vmul.f32 %v1349, %v780
        %v1351 = vmul.f32 %v1349, %v781
        %v1352 = vadd.f32 %v1347, %v1350
        %v1353 = vadd.f32 %v1348, %v1351
        %v1354 = vstv %s586
        %v1355 = vmul.f32 %v1354, %v802
        %v1356 = vmul.f32 %v1354, %v803
        %v1357 = vadd.f32 %v1352, %v1355
        %v1358 = vadd.f32 %v1353, %v1356
        %v1359 = vstv %s635
        %v1360 = vmul.f32 %v1359, %v810
        %v1361 = vmul.f32 %v1359, %v811
        %v1362 = vadd.f32 %v1357, %v1360
        %v1363 = vadd.f32 %v1358, %v1361
        %v1364 = vstv %s587
        %v1365 = vmul.f32 %v1364, %v832
        %v1366 = vmul.f32 %v1364, %v833
        %v1367 = vadd.f32 %v1362, %v1365
        %v1368 = vadd.f32 %v1363, %v1366
        %v1369 = vstv %s636
        %v1370 = vmul.f32 %v1369, %v840
        %v1371 = vmul.f32 %v1369, %v841
        %v1372 = vadd.f32 %v1367, %v1370
        %v1373 = vadd.f32 %v1368, %v1371
        %s1374 = scalar_lea.vmem %s6, 5
        %v1375 = vld [vmem:[%s1374] ss:$8 sm:$0x3]
        %1376 = vrot.lane.b32.xlu0 %v1372, 96
        %v1377 = vpop.permute.xlu0 %1376
        %1378 = vrot.lane.b32.xlu0 %v1373, 96
        %v1379 = vpop.permute.xlu0 %1378
        %vm1380 = vcmp.lt.s32.totalorder %v650, 96
        %v1381 = vsel %vm1380, %v1377, %v1379
        %v1382 = vsel %vm1380, %v1379, %v1377
        %v1384 = vlaneseq
        %v1385 = vshrl.u32 %v1384, 7
        %v1386 = vsub.s32 0, %v1385
        %v1387 = vrot.slane %v1375, %v1386
        %v1388 = vlaneseq
        %v1389 = vshrl.u32 %v1388, 7
        %v1390 = vsub.s32 1, %v1389
        %v1391 = vrot.slane %v1375, %v1390
        %v1394 = vmul.f32 %v1381, %v1387
        %v1395 = vmul.f32 %v1382, %v1391
        %v1396 = vadd.f32 %v1302, %v1394
        %v1397 = vadd.f32 %v1303, %v1395
        %v1398 = vstv %s588
        %v1399 = vmul.f32 %v1398, %v665
        %v1400 = vmul.f32 %v1398, %v666
        %v1401 = vadd.f32 %v1399, 0.0
        %v1402 = vadd.f32 %v1400, 0.0
        %v1403 = vstv %s637
        %v1404 = vmul.f32 %v1403, %v673
        %v1405 = vmul.f32 %v1403, %v674
        %v1406 = vadd.f32 %v1401, %v1404
        %v1407 = vadd.f32 %v1402, %v1405
        %v1408 = vstv %s589
        %v1409 = vmul.f32 %v1408, %v695
        %v1410 = vmul.f32 %v1408, %v696
        %v1411 = vadd.f32 %v1406, %v1409
        %v1412 = vadd.f32 %v1407, %v1410
        %v1413 = vstv %s638
        %v1414 = vmul.f32 %v1413, %v703
        %v1415 = vmul.f32 %v1413, %v704
        %v1416 = vadd.f32 %v1411, %v1414
        %v1417 = vadd.f32 %v1412, %v1415
        %v1418 = vstv %s590
        %v1419 = vmul.f32 %v1418, %v725
        %v1420 = vmul.f32 %v1418, %v726
        %v1421 = vadd.f32 %v1416, %v1419
        %v1422 = vadd.f32 %v1417, %v1420
        %v1423 = vstv %s639
        %v1424 = vmul.f32 %v1423, %v733
        %v1425 = vmul.f32 %v1423, %v734
        %v1426 = vadd.f32 %v1421, %v1424
        %v1427 = vadd.f32 %v1422, %v1425
        %v1428 = vstv %s591
        %v1429 = vmul.f32 %v1428, %v748
        %v1430 = vmul.f32 %v1428, %v749
        %v1431 = vadd.f32 %v1426, %v1429
        %v1432 = vadd.f32 %v1427, %v1430
        %v1433 = vstv %s640
        %v1434 = vmul.f32 %v1433, %v750
        %v1435 = vmul.f32 %v1433, %v751
        %v1436 = vadd.f32 %v1431, %v1434
        %v1437 = vadd.f32 %v1432, %v1435
        %v1438 = vstv %s592
        %v1439 = vmul.f32 %v1438, %v772
        %v1440 = vmul.f32 %v1438, %v773
        %v1441 = vadd.f32 %v1436, %v1439
        %v1442 = vadd.f32 %v1437, %v1440
        %v1443 = vstv %s641
        %v1444 = vmul.f32 %v1443, %v780
        %v1445 = vmul.f32 %v1443, %v781
        %v1446 = vadd.f32 %v1441, %v1444
        %v1447 = vadd.f32 %v1442, %v1445
        %v1448 = vstv %s593
        %v1449 = vmul.f32 %v1448, %v802
        %v1450 = vmul.f32 %v1448, %v803
        %v1451 = vadd.f32 %v1446, %v1449
        %v1452 = vadd.f32 %v1447, %v1450
        %v1453 = vstv %s642
        %v1454 = vmul.f32 %v1453, %v810
        %v1455 = vmul.f32 %v1453, %v811
        %v1456 = vadd.f32 %v1451, %v1454
        %v1457 = vadd.f32 %v1452, %v1455
        %v1458 = vstv %s594
        %v1459 = vmul.f32 %v1458, %v832
        %v1460 = vmul.f32 %v1458, %v833
        %v1461 = vadd.f32 %v1456, %v1459
        %v1462 = vadd.f32 %v1457, %v1460
        %v1463 = vstv %s643
        %v1464 = vmul.f32 %v1463, %v840
        %v1465 = vmul.f32 %v1463, %v841
        %v1466 = vadd.f32 %v1461, %v1464
        %v1467 = vadd.f32 %v1462, %v1465
        %s1468 = scalar_lea.vmem %s6, 6
        %v1469 = vld [vmem:[%s1468] ss:$8 sm:$0x3]
        %1470 = vrot.lane.b32.xlu0 %v1466, 80
        %v1471 = vpop.permute.xlu0 %1470
        %1472 = vrot.lane.b32.xlu0 %v1467, 80
        %v1473 = vpop.permute.xlu0 %1472
        %vm1474 = vcmp.lt.s32.totalorder %v650, 80
        %v1475 = vsel %vm1474, %v1471, %v1473
        %v1476 = vsel %vm1474, %v1473, %v1471
        %v1478 = vlaneseq
        %v1479 = vshrl.u32 %v1478, 7
        %v1480 = vsub.s32 0, %v1479
        %v1481 = vrot.slane %v1469, %v1480
        %v1482 = vlaneseq
        %v1483 = vshrl.u32 %v1482, 7
        %v1484 = vsub.s32 1, %v1483
        %v1485 = vrot.slane %v1469, %v1484
        %v1488 = vmul.f32 %v1475, %v1481
        %v1489 = vmul.f32 %v1476, %v1485
        %v1490 = vadd.f32 %v1396, %v1488
        %v1491 = vadd.f32 %v1397, %v1489
        %v1492 = vxor.u32 %v1490, 2147483648
        %v1493 = vxor.u32 %v1491, 2147483648
        %v1494 = vmul.f32 %v1492, 1.442695
        %v1495 = vpow.pop %v1494
        %v1496 = vmul.f32 %v1493, 1.442695
        %v1497 = vpow.pop %v1496
        %v1498 = vadd.f32 %v1495, 1.0
        %v1499 = vadd.f32 %v1497, 1.0
        %v1500 = vrcp.pop %v1498
        %v1501 = vmul.f32 1.0, %v1500
        %v1502 = vrcp.pop %v1499
        %v1503 = vmul.f32 1.0, %v1502
        %v1504 = vlaneseq
        %v1505 = vshrl.u32 %v1504, 7
        %v1506 = vsub.s32 0, %v1505
        %v1507 = vrot.slane %v1501, %v1506
        %v1508 = vlaneseq
        %v1509 = vshrl.u32 %v1508, 7
        %v1510 = vsub.s32 0, %v1509
        %v1511 = vrot.slane %v1503, %v1510
        %v1512 = vmul.f32 %v511, %v1507
        %v1513 = vmul.f32 %v512, %v1511
        %v1514 = vmul.f32 %v513, %v1507
        %v1515 = vmul.f32 %v514, %v1511
        %1516 = vst [vmem:[%s312] sm:$0xff] %v1512
        %1517 = vst [vmem:[%s312 + $0x8] sm:$0xff] %v1513
        %1518 = vst [vmem:[%s312 + $0x10] sm:$0xff] %v1514
        %1519 = vst [vmem:[%s312 + $0x18] sm:$0xff] %v1515
        %s1520 = sand.u32 %s204, 1
        %s1521 = scalar_lea.sflag [#allocation3], %s1520
        %s1522 = sand.u32 %s204, 1
        %s1523 = smul.addr %s1522, 32
        %s1524 = scalar_lea.vmem [#allocation5], %s1523
        // Predicated region
        $region57: #{tpu_custom_call.1} parent=51 // pred_check
          %p1525 = pneg %p214
        $region58: #{tpu_custom_call.1} parent=51 // pred_check_branch
          %1527 = sbr.rel (%p1525) target = $region60
        $region59: #{tpu_custom_call.1} parent=51 // pred_region
          %s1529 = ssub.s32 512, 512
          %1530 = vsyncadd %s1521, %s1529
          %s1531 = smul.addr %s23, 4
          %s1532 = smul.addr %s1531, 128
          %s1533 = scalar_lea.hbm %s8, %s1532
          %s1534 = sshll.u32 %s1524, 4
          %s1535 = int_to_ptr.vmem [resolvable:$true] %s1534
          %1540 = dma.vmem_to_hbm [thread:$0]  %s1535, 512, %s1533, %s1521, 256, 256, 16
        $region60: #{tpu_custom_call.1} parent=51 // pred_fallthru
          _
      $region52: #{tpu_custom_call.1} parent=5 // pred_fallthru
        _
      %p1541 = scmp.le.s32.totalorder 2, %s18
      // Predicated region
      $region61: #{tpu_custom_call.1} parent=5 // pred_check
        %p1542 = pneg %p1541
      $region62: #{tpu_custom_call.1} parent=5 // pred_check_branch
        %1544 = sbr.rel (%p1542) target = $region64
      $region63: #{tpu_custom_call.1} parent=5 // pred_region
        %s1545 = ssub.s32 %s18, 2
        // Predicated region
        $region65: #{tpu_custom_call.1} parent=63 // pred_check
          %p1546 = pneg %p220
        $region66: #{tpu_custom_call.1} parent=63 // pred_check_branch
          %1548 = sbr.rel (%p1546) target = $region68
        $region67: #{tpu_custom_call.1} parent=63 // pred_region
          %s1549 = sand.u32 %s205, 1
          %s1550 = scalar_lea.sflag [#allocation3], %s1549
          %s1551 = sand.u32 %s205, 1
          %s1552 = smul.addr %s1551, 32
          %s1553 = scalar_lea.vmem [#allocation5], %s1552
          %1554 = dma.done %s1550, 512
        $region68: #{tpu_custom_call.1} parent=63 // pred_fallthru
          _
      $region64: #{tpu_custom_call.1} parent=5 // pred_fallthru
        _
    $region6: #{tpu_custom_call.1} parent=1 // loop_footer
      %s22 = sadd.s32 1, %s18
    $region7: #{tpu_custom_call.1} parent=1 // loop_footer_branch
      %17 = sbr.rel target = $region3
    $region8: #{tpu_custom_call.1} parent=1 // loop_exit
      _
    %1555 = vsyncpa [#allocation3], 1
    %s1556 = scalar_lea.sflag [#allocation3], 1
    %1557 = vsyncpa %s1556, 1
    %1558 = vsyncpa [#allocation4], 1
    %s1559 = scalar_lea.sflag [#allocation4], 1
    %1560 = vsyncpa %s1559, 1

</llo_original>
